<compile_context>
chip_gen: v5e
topology: v5e:2x2
jax: 0.10.0
libtpu: 0.0.40
codegen_flags: <defaults>
</compile_context>

<pallas_src>
import math

import jax
import jax.numpy as jnp
import numpy as np
from jax.experimental import pallas as pl
from jax.experimental.pallas import tpu as pltpu

LN_EPS = 1e-12


# ----------------------------- small helpers ----------------------------- #
def _round_up(x, m):
    return ((x + m - 1) // m) * m


def _gelu(x):
    # Exact (erf-based) gelu, matching BERT/RoBERTa ACT2FN["gelu"].
    return x * 0.5 * (1.0 + jax.lax.erf(x / jnp.float32(math.sqrt(2.0))))


def _layer_norm(x, gamma, beta, eps=LN_EPS):
    u = jnp.mean(x, axis=-1, keepdims=True)
    s = jnp.mean((x - u) ** 2, axis=-1, keepdims=True)
    return gamma * ((x - u) / jnp.sqrt(s + eps)) + beta


def _vmem_capacity_bytes():
    """Per-core VMEM capacity; conservative (v7x: 64 MiB) if the query fails."""
    try:
        return int(getattr(pltpu.get_tpu_info(), "vmem_capacity_bytes", 64 << 20))
    except Exception:
        return 64 << 20


# ------------------------------ Pallas kernel ----------------------------- #
def _make_mlp_decoder_kernel(mlp_chunk):
    """Fused gelu/LN -> linear2/gelu/LN -> streamed tied decoder.

    Grid: (row tiles [parallel], vocab tiles [arbitrary, inner]).  The MLP result
    for a row tile is computed once (vocab index == 0), in sub-chunks of
    `mlp_chunk` rows to bound f32 temporaries, and cached in VMEM scratch.
    """

    def kernel(
        pre_ref,        # (tm, H) f32: linear1 pre-activation (decomposed, bias included)
        side_ref,       # (8, H) f32: rows = [g1, be1, b2, g2, be2, 0, 0, 0]
        w2_ref,         # (H, H) linear2 weight (compute dtype)
        wd_ref,         # (H, tn) streamed decoder weight tile (compute dtype)
        bd_ref,         # (1, tn) f32 vocab bias tile
        o_ref,          # (tm, tn) logits tile
        h_ref,          # VMEM scratch (tm, H): cached MLP output for this row tile
    ):
        @pl.when(pl.program_id(1) == 0)
        def _():
            side = side_ref[...].astype(jnp.float32)
            g1, be1 = side[0:1, :], side[1:2, :]
            b2 = side[2:3, :]
            g2, be2 = side[3:4, :], side[4:5, :]
            n_chunks = h_ref.shape[0] // mlp_chunk

            def body(c, carry):
                off = pl.multiple_of(c * mlp_chunk, mlp_chunk)
                x = pre_ref[pl.ds(off, mlp_chunk), :].astype(jnp.float32)
                hh = _layer_norm(_gelu(x), g1, be1)
                hh = (
                    jnp.dot(hh.astype(w2_ref.dtype), w2_ref[...],
                            preferred_element_type=jnp.float32)
                    + b2
                )
                hh = _layer_norm(_gelu(hh), g2, be2)
                h_ref[pl.ds(off, mlp_chunk), :] = hh.astype(h_ref.dtype)
                return carry

            jax.lax.fori_loop(0, n_chunks, body, 0)

        # Decoder: MXU matmul against the streamed (H, tn) weight tile + vocab bias.
        o_ref[...] = (
            jnp.dot(h_ref[...], wd_ref[...], preferred_element_type=jnp.float32)
            + bd_ref[...]
        ).astype(o_ref.dtype)

    return kernel


# ------------------------------ kernel wrapper ----------------------------- #
def mlp_decoder(pre, side, w2, wd, bd, *, tm, tn, mlp_chunk, out_dtype=jnp.bfloat16):
    """pre: (M, H) linear1 pre-activation -> logits (M, V_pad) in out_dtype.

    Caller guarantees M % tm == 0, V_pad % tn == 0, tm % mlp_chunk == 0.
    """
    m, h = pre.shape
    v = wd.shape[1]
    assert m % tm == 0 and v % tn == 0 and tm % mlp_chunk == 0
    grid = (m // tm, v // tn)

    # VMEM estimate: double-buffered inputs + output tile, plus the scratch and the
    # chunked MLP temporaries; 30% headroom for padding/fragmentation.  The limit is
    # generation-aware (128 MiB physical on v5e/v6e, 64 MiB on v7x).
    wb = jnp.dtype(wd.dtype).itemsize
    ob = jnp.dtype(out_dtype).itemsize
    est = (
        2 * (tm * h * 4 + 8 * h * 4 + h * h * wb + h * tn * wb + 8 * tn * 4 + tm * tn * ob)
        + tm * h * wb
        + 4 * mlp_chunk * h * 4
    )
    est = int(est * 1.3) + (2 << 20)
    cap = _vmem_capacity_bytes()
    vmem_limit = int(min((cap * 7) // 8, max(est, 48 << 20)))

    return pl.pallas_call(
        _make_mlp_decoder_kernel(mlp_chunk),
        out_shape=jax.ShapeDtypeStruct((m, v), out_dtype),
        grid=grid,
        in_specs=[
            pl.BlockSpec((tm, h), lambda i, j: (i, 0)),   # row tile (reused across vocab tiles)
            pl.BlockSpec((8, h), lambda i, j: (0, 0)),    # packed LN/bias side params
            pl.BlockSpec((h, h), lambda i, j: (0, 0)),    # linear2 weight (resident)
            pl.BlockSpec((h, tn), lambda i, j: (0, j)),   # streamed decoder weight tile
            pl.BlockSpec((1, tn), lambda i, j: (0, j)),   # vocab bias tile
        ],
        out_specs=pl.BlockSpec((tm, tn), lambda i, j: (i, j)),
        scratch_shapes=[pltpu.VMEM((tm, h), wd.dtype)],
        compiler_params=pltpu.CompilerParams(
            dimension_semantics=("parallel", "arbitrary"),
            vmem_limit_bytes=vmem_limit,
        ),
    )(pre, side, w2, wd, bd)


# ------------------------------ parameter setup ----------------------------- #
def build_params(key, hidden_size, kp_max_seq_len, pos_emb_size, vocab_size):
    """Raw, PyTorch-equivalent parameters (all f32)."""
    h, k, p, v = hidden_size, kp_max_seq_len, pos_emb_size, vocab_size
    din = 2 * h + p
    keys = jax.random.split(key, 13)
    std = 0.02
    return {
        "wc": jax.random.normal(keys[0], (2 * h, k), jnp.float32) * std,
        "bc": jax.random.normal(keys[1], (1, k), jnp.float32) * std,
        "pos_emb": jax.random.normal(keys[2], (k, p), jnp.float32) * std,
        "w1": jax.random.normal(keys[3], (din, h), jnp.float32) * std,
        "b1": jax.random.normal(keys[4], (1, h), jnp.float32) * std,
        "g1": 1.0 + jax.random.normal(keys[5], (1, h), jnp.float32) * std,
        "be1": jax.random.normal(keys[6], (1, h), jnp.float32) * std,
        "w2": jax.random.normal(keys[7], (h, h), jnp.float32) * std,
        "b2": jax.random.normal(keys[8], (1, h), jnp.float32) * std,
        "g2": 1.0 + jax.random.normal(keys[9], (1, h), jnp.float32) * std,
        "be2": jax.random.normal(keys[10], (1, h), jnp.float32) * std,
        "emb": jax.random.normal(keys[11], (v, h), jnp.float32) * std,   # tied (V, H)
        "bias_v": jax.random.normal(keys[12], (1, v), jnp.float32) * std,
        "kp_max_seq_len": k,
    }


def prepare_kernel_params(params, *, tn=1024, weight_dtype=jnp.bfloat16):
    """One-time (per-model) preprocessing hoisted out of the traced forward pass:
    split w1/wc per input segment, pre-transpose + pad + cast the tied decoder weight,
    pad the vocab bias, pack the (1, H) side params into a single (8, H) array.

    tn tuning: 1024 is a good default on v7x (amortizes per-step overhead at 3.2 TB/s);
    512-1024 on v6e/v5e (already near the HBM roofline plateau there)."""
    assert tn % 128 == 0, "vocab tile must be lane-aligned"
    h = params["w2"].shape[0]
    v = params["emb"].shape[0]
    tn = min(tn, _round_up(v, 128))
    v_pad = _round_up(v, tn)

    emb_t = params["emb"].T.astype(weight_dtype)                    # (H, V), transposed once
    emb_t = jnp.pad(emb_t, ((0, 0), (0, v_pad - v)))
    bias_v = jnp.pad(params["bias_v"], ((0, 0), (0, v_pad - v)))

    # Packed side params for the fused kernel: rows = [g1, be1, b2, g2, be2, 0, 0, 0].
    side = jnp.concatenate(
        [params["g1"], params["be1"], params["b2"], params["g2"], params["be2"],
         jnp.zeros((3, h), jnp.float32)],
        axis=0,
    )

    return {
        # num_tok classifier, split to avoid the HBM concat
        "wc_l": params["wc"][:h], "wc_r": params["wc"][h:], "bc": params["bc"],
        # decomposed linear1
        "w1_l": params["w1"][:h], "w1_r": params["w1"][h : 2 * h], "w1_p": params["w1"][2 * h :],
        "b1": params["b1"], "pos_emb": params["pos_emb"],
        # fused-kernel params
        "side": side,
        "w2": params["w2"].astype(weight_dtype),
        "emb_t": emb_t, "bias_v": bias_v,
        "v": v, "v_pad": v_pad, "tn": tn,
        "kp_max_seq_len": params["kp_max_seq_len"],
    }


# ------------------------------ forward (glue + kernel) ----------------------------- #
def infilling_head_forward(prepared, hidden_states, pairs, *, tm=1024,
                           logits_dtype=jnp.bfloat16):
    bs, num_pairs, _ = pairs.shape
    _, seq_len, dim = hidden_states.shape
    k = prepared["kp_max_seq_len"]

    left = pairs[:, :, 0].astype(jnp.int32)
    right = pairs[:, :, 1].astype(jnp.int32)

    # Endpoint gathers stay in XLA (glue, not the hot path).
    lh = jnp.take_along_axis(
        hidden_states, jnp.broadcast_to(left[:, :, None], (bs, num_pairs, dim)), axis=1
    ).reshape(bs * num_pairs, dim)
    rh = jnp.take_along_axis(
        hidden_states, jnp.broadcast_to(right[:, :, None], (bs, num_pairs, dim)), axis=1
    ).reshape(bs * num_pairs, dim)

    # ---- num_tok classifier: tiny (<=10 output lanes) -> plain XLA, no concat ----
    num_tok_scores = (lh @ prepared["wc_l"] + rh @ prepared["wc_r"] + prepared["bc"]).reshape(
        bs, num_pairs, k
    )

    # ---- decomposed linear1: x@w1 == lh@w1_l + rh@w1_r + pos@w1_p ----
    n = bs * num_pairs
    lr_part = lh @ prepared["w1_l"] + rh @ prepared["w1_r"]               # (N, H)
    posb = prepared["pos_emb"] @ prepared["w1_p"] + prepared["b1"]        # (K, H)
    pre = (lr_part[:, None, :] + posb[None, :, :]).reshape(n * k, dim)    # (N*K, H)

    # ---- row tile selection + padding ----
    m = n * k
    m_rnd = _round_up(m, 8)
    tm = min(_round_up(tm, 8), m_rnd)
    # Keep >= 2 row tiles when there is enough work, so the "parallel" row axis can
    # split across v7x's two TensorCores (harmless on 1-TC v5e/v6e).
    if tm >= m_rnd and m_rnd >= 512:
        tm = _round_up((m_rnd + 1) // 2, 8)
    m_pad = _round_up(m, tm)
    if m_pad != m:
        pre = jnp.pad(pre, ((0, m_pad - m), (0, 0)))
    mlp_chunk = math.gcd(tm, 256)   # bounds f32 gelu/LN temporaries inside the kernel

    # ---- fused gelu/LN -> linear2/gelu/LN -> streamed decoder (Pallas kernel) ----
    logits_pad = mlp_decoder(
        pre,
        prepared["side"], prepared["w2"],
        prepared["emb_t"], prepared["bias_v"],
        tm=tm, tn=prepared["tn"], mlp_chunk=mlp_chunk, out_dtype=logits_dtype,
    )
    kp_logits = logits_pad[:m, : prepared["v"]].reshape(n, k, prepared["v"])
    return kp_logits, num_tok_scores


# ------------------------------ pure-JAX f32 reference ----------------------------- #
def _reference_forward(params, hidden_states, pairs):
    bs, num_pairs, _ = pairs.shape
    _, seq_len, dim = hidden_states.shape
    k = params["kp_max_seq_len"]
    left = pairs[:, :, 0].astype(jnp.int32)
    right = pairs[:, :, 1].astype(jnp.int32)
    lh = jnp.take_along_axis(
        hidden_states, jnp.broadcast_to(left[:, :, None], (bs, num_pairs, dim)), axis=1
    ).reshape(bs * num_pairs, dim)
    rh = jnp.take_along_axis(
        hidden_states, jnp.broadcast_to(right[:, :, None], (bs, num_pairs, dim)), axis=1
    ).reshape(bs * num_pairs, dim)
    num_tok = (jnp.concatenate([lh, rh], -1) @ params["wc"] + params["bc"]).reshape(
        bs, num_pairs, k
    )
    n = bs * num_pairs
    x = jnp.concatenate(
        [
            jnp.broadcast_to(lh[:, None, :], (n, k, dim)),
            jnp.broadcast_to(rh[:, None, :], (n, k, dim)),
            jnp.broadcast_to(params["pos_emb"][None], (n, k, params["pos_emb"].shape[1])),
        ],
        -1,
    ).reshape(n * k, -1)
    h = _layer_norm(_gelu(x @ params["w1"] + params["b1"]), params["g1"], params["be1"])
    h = _layer_norm(_gelu(h @ params["w2"] + params["b2"]), params["g2"], params["be2"])
    logits = (h @ params["emb"].T + params["bias_v"]).reshape(n, k, params["emb"].shape[0])
    return logits, num_tok


# ------------------------------ main ----------------------------- #
if __name__ == "__main__":
    bs, num_pairs, seq_len = 2, 3, 16
    hidden_size = 32          # config.hidden_size
    kp_max_seq_len = 10       # K (module default)
    pos_emb_size = 24         # position_embedding_size
    vocab_size = 500          # not a multiple of 128 -> exercises the vocab-padding path

    key = jax.random.PRNGKey(0)
    kparam, kh, kpair = jax.random.split(key, 3)

    params = build_params(kparam, hidden_size, kp_max_seq_len, pos_emb_size, vocab_size)
    # Small tiles for the toy demo (2x2 grid); defaults (tm=1024, tn=1024) target real sizes.
    prepared = prepare_kernel_params(params, tn=256, weight_dtype=jnp.bfloat16)

    hidden_states = jax.random.normal(kh, (bs, seq_len, hidden_size), jnp.float32)
    pairs = jax.random.randint(kpair, (bs, num_pairs, 2), 0, seq_len, jnp.int32)

    kp_logits, num_tok_scores = infilling_head_forward(prepared, hidden_states, pairs, tm=32)
    jax.block_until_ready((kp_logits, num_tok_scores))

    ref_logits, ref_num_tok = _reference_forward(params, hidden_states, pairs)
    np.testing.assert_allclose(
        np.asarray(num_tok_scores), np.asarray(ref_num_tok), atol=1e-4, rtol=1e-4
    )
    # bf16 weight streaming + bf16 logit output -> loosened logit tolerance.
    np.testing.assert_allclose(
        np.asarray(kp_logits, dtype=np.float32), np.asarray(ref_logits), atol=2e-2, rtol=2e-2
    )

    assert kp_logits.shape == (bs * num_pairs, kp_max_seq_len, vocab_size)
    assert num_tok_scores.shape == (bs, num_pairs, kp_max_seq_len)
    print("KERNEL_OK")
</pallas_src>

<mosaic_0001>
module attributes {stable_mosaic.version = 11 : i64} {
  func.func @kernel(%arg0: i32, %arg1: i32, %arg2: memref<32x32xf32, #tpu.memory_space<vmem>>, %arg3: memref<8x32xf32, #tpu.memory_space<vmem>>, %arg4: memref<32x32xbf16, #tpu.memory_space<vmem>>, %arg5: memref<32x256xbf16, #tpu.memory_space<vmem>>, %arg6: memref<1x256xf32, #tpu.memory_space<vmem>>, %arg7: memref<32x256xbf16, #tpu.memory_space<vmem>>, %arg8: memref<32x32xbf16, #tpu.memory_space<vmem>>) attributes {dimension_semantics = [#tpu.dimension_semantics<parallel>, #tpu.dimension_semantics<arbitrary>], iteration_bounds = array<i64: 2, 2>, scalar_prefetch = 0 : i64, scratch_operands = 1 : i64, tpu.core_type = #tpu.core_type<tc>, window_params = [{transform_indices = @transform_0, window_bounds = array<i64: 32, 32>}, {pipeline_mode = #tpu.pipeline_mode<synchronous>, transform_indices = @transform_1, window_bounds = array<i64: 8, 32>}, {pipeline_mode = #tpu.pipeline_mode<synchronous>, transform_indices = @transform_2, window_bounds = array<i64: 32, 32>}, {transform_indices = @transform_3, window_bounds = array<i64: 32, 256>}, {transform_indices = @transform_4, window_bounds = array<i64: 1, 256>}, {transform_indices = @transform_5, window_bounds = array<i64: 32, 256>}]} {
    %c0_i32 = arith.constant 0 : i32
    %0 = arith.cmpi eq, %arg1, %c0_i32 : i32
    %1 = arith.extui %0 : i1 to i32
    %c0_i32_0 = arith.constant 0 : i32
    %2 = arith.cmpi ne, %1, %c0_i32_0 : i32
    scf.if %2 {
      %c0_8 = arith.constant 0 : index
      %c0_9 = arith.constant 0 : index
      %11 = vector.load %arg3[%c0_8, %c0_9] : memref<8x32xf32, #tpu.memory_space<vmem>>, vector<8x32xf32>
      %12 = vector.extract_strided_slice %11 {offsets = [0, 0], sizes = [1, 32], strides = [1, 1]} : vector<8x32xf32> to vector<1x32xf32>
      %13 = vector.extract_strided_slice %11 {offsets = [1, 0], sizes = [1, 32], strides = [1, 1]} : vector<8x32xf32> to vector<1x32xf32>
      %14 = vector.extract_strided_slice %11 {offsets = [2, 0], sizes = [1, 32], strides = [1, 1]} : vector<8x32xf32> to vector<1x32xf32>
      %15 = vector.extract_strided_slice %11 {offsets = [3, 0], sizes = [1, 32], strides = [1, 1]} : vector<8x32xf32> to vector<1x32xf32>
      %16 = vector.extract_strided_slice %11 {offsets = [4, 0], sizes = [1, 32], strides = [1, 1]} : vector<8x32xf32> to vector<1x32xf32>
      %c0_i32_10 = arith.constant 0 : i32
      %c32_i32 = arith.constant 32 : i32
      %17 = arith.muli %c0_i32_10, %c32_i32 : i32
      %18 = tpu.assume_multiple %17, 32 : i32
      %19 = arith.index_cast %18 : i32 to index
      %c0_11 = arith.constant 0 : index
      %20 = vector.load %arg2[%19, %c0_11] : memref<32x32xf32, #tpu.memory_space<vmem>>, vector<32x32xf32>
      %cst_12 = arith.constant 5.000000e-01 : f32
      %21 = vector.broadcast %cst_12 : f32 to vector<32x32xf32>
      %22 = arith.mulf %20, %21 : vector<32x32xf32>
      %cst_13 = arith.constant 1.41421354 : f32
      %23 = vector.broadcast %cst_13 : f32 to vector<32x32xf32>
      %24 = arith.divf %20, %23 : vector<32x32xf32>
      %25 = math.erf %24 : vector<32x32xf32>
      %cst_14 = arith.constant 1.000000e+00 : f32
      %26 = vector.broadcast %cst_14 : f32 to vector<32x32xf32>
      %27 = arith.addf %26, %25 : vector<32x32xf32>
      %28 = arith.mulf %22, %27 : vector<32x32xf32>
      %cst_15 = arith.constant dense<0.000000e+00> : vector<32xf32>
      %29 = vector.multi_reduction <add>, %28, %cst_15 [1] : vector<32x32xf32> to vector<32xf32>
      %30 = vector.shape_cast %29 : vector<32xf32> to vector<32x1xf32>
      %cst_16 = arith.constant 3.200000e+01 : f32
      %31 = vector.broadcast %cst_16 : f32 to vector<32x1xf32>
      %32 = arith.divf %30, %31 : vector<32x1xf32>
      %33 = vector.broadcast %32 : vector<32x1xf32> to vector<32x32xf32>
      %34 = arith.subf %28, %33 : vector<32x32xf32>
      %35 = arith.mulf %34, %34 : vector<32x32xf32>
      %cst_17 = arith.constant dense<0.000000e+00> : vector<32xf32>
      %36 = vector.multi_reduction <add>, %35, %cst_17 [1] : vector<32x32xf32> to vector<32xf32>
      %37 = vector.shape_cast %36 : vector<32xf32> to vector<32x1xf32>
      %cst_18 = arith.constant 3.200000e+01 : f32
      %38 = vector.broadcast %cst_18 : f32 to vector<32x1xf32>
      %39 = arith.divf %37, %38 : vector<32x1xf32>
      %40 = vector.broadcast %32 : vector<32x1xf32> to vector<32x32xf32>
      %41 = arith.subf %28, %40 : vector<32x32xf32>
      %cst_19 = arith.constant 9.99999996E-13 : f32
      %42 = vector.broadcast %cst_19 : f32 to vector<32x1xf32>
      %43 = arith.addf %39, %42 : vector<32x1xf32>
      %44 = math.sqrt %43 : vector<32x1xf32>
      %45 = vector.broadcast %44 : vector<32x1xf32> to vector<32x32xf32>
      %46 = arith.divf %41, %45 : vector<32x32xf32>
      %47 = vector.broadcast %12 : vector<1x32xf32> to vector<32x32xf32>
      %48 = arith.mulf %47, %46 : vector<32x32xf32>
      %49 = vector.broadcast %13 : vector<1x32xf32> to vector<32x32xf32>
      %50 = arith.addf %48, %49 : vector<32x32xf32>
      %51 = arith.truncf %50 : vector<32x32xf32> to vector<32x32xbf16>
      %c0_20 = arith.constant 0 : index
      %c0_21 = arith.constant 0 : index
      %52 = vector.load %arg4[%c0_20, %c0_21] : memref<32x32xbf16, #tpu.memory_space<vmem>>, vector<32x32xbf16>
      %cst_22 = arith.constant dense<0.000000e+00> : vector<32x32xf32>
      %53 = tpu.matmul %51, %52, %cst_22 {dimension_numbers = #tpu.dot_dimension_numbers<[1], [0], [0], [1], [0, 0, 1, 1], [], []>} : vector<32x32xbf16>, vector<32x32xbf16>, vector<32x32xf32> -> vector<32x32xf32>
      %54 = vector.broadcast %14 : vector<1x32xf32> to vector<32x32xf32>
      %55 = arith.addf %53, %54 : vector<32x32xf32>
      %cst_23 = arith.constant 5.000000e-01 : f32
      %56 = vector.broadcast %cst_23 : f32 to vector<32x32xf32>
      %57 = arith.mulf %55, %56 : vector<32x32xf32>
      %cst_24 = arith.constant 1.41421354 : f32
      %58 = vector.broadcast %cst_24 : f32 to vector<32x32xf32>
      %59 = arith.divf %55, %58 : vector<32x32xf32>
      %60 = math.erf %59 : vector<32x32xf32>
      %cst_25 = arith.constant 1.000000e+00 : f32
      %61 = vector.broadcast %cst_25 : f32 to vector<32x32xf32>
      %62 = arith.addf %61, %60 : vector<32x32xf32>
      %63 = arith.mulf %57, %62 : vector<32x32xf32>
      %cst_26 = arith.constant dense<0.000000e+00> : vector<32xf32>
      %64 = vector.multi_reduction <add>, %63, %cst_26 [1] : vector<32x32xf32> to vector<32xf32>
      %65 = vector.shape_cast %64 : vector<32xf32> to vector<32x1xf32>
      %cst_27 = arith.constant 3.200000e+01 : f32
      %66 = vector.broadcast %cst_27 : f32 to vector<32x1xf32>
      %67 = arith.divf %65, %66 : vector<32x1xf32>
      %68 = vector.broadcast %67 : vector<32x1xf32> to vector<32x32xf32>
      %69 = arith.subf %63, %68 : vector<32x32xf32>
      %70 = arith.mulf %69, %69 : vector<32x32xf32>
      %cst_28 = arith.constant dense<0.000000e+00> : vector<32xf32>
      %71 = vector.multi_reduction <add>, %70, %cst_28 [1] : vector<32x32xf32> to vector<32xf32>
      %72 = vector.shape_cast %71 : vector<32xf32> to vector<32x1xf32>
      %cst_29 = arith.constant 3.200000e+01 : f32
      %73 = vector.broadcast %cst_29 : f32 to vector<32x1xf32>
      %74 = arith.divf %72, %73 : vector<32x1xf32>
      %75 = vector.broadcast %67 : vector<32x1xf32> to vector<32x32xf32>
      %76 = arith.subf %63, %75 : vector<32x32xf32>
      %cst_30 = arith.constant 9.99999996E-13 : f32
      %77 = vector.broadcast %cst_30 : f32 to vector<32x1xf32>
      %78 = arith.addf %74, %77 : vector<32x1xf32>
      %79 = math.sqrt %78 : vector<32x1xf32>
      %80 = vector.broadcast %79 : vector<32x1xf32> to vector<32x32xf32>
      %81 = arith.divf %76, %80 : vector<32x32xf32>
      %82 = vector.broadcast %15 : vector<1x32xf32> to vector<32x32xf32>
      %83 = arith.mulf %82, %81 : vector<32x32xf32>
      %84 = vector.broadcast %16 : vector<1x32xf32> to vector<32x32xf32>
      %85 = arith.addf %83, %84 : vector<32x32xf32>
      %86 = arith.truncf %85 : vector<32x32xf32> to vector<32x32xbf16>
      %87 = arith.index_cast %18 : i32 to index
      %c0_31 = arith.constant 0 : index
      %88 = vector.load %arg8[%87, %c0_31] : memref<32x32xbf16, #tpu.memory_space<vmem>>, vector<32x32xbf16>
      tpu.vector_store %arg8[%87, %c0_31], %86 {strides = array<i32>} : memref<32x32xbf16, #tpu.memory_space<vmem>>, vector<32x32xbf16>,
      %c1_i32 = arith.constant 1 : i32
    } else {
    }
    %c0 = arith.constant 0 : index
    %c0_1 = arith.constant 0 : index
    %3 = vector.load %arg8[%c0, %c0_1] : memref<32x32xbf16, #tpu.memory_space<vmem>>, vector<32x32xbf16>
    %c0_2 = arith.constant 0 : index
    %c0_3 = arith.constant 0 : index
    %4 = vector.load %arg5[%c0_2, %c0_3] : memref<32x256xbf16, #tpu.memory_space<vmem>>, vector<32x256xbf16>
    %cst = arith.constant dense<0.000000e+00> : vector<32x256xf32>
    %5 = tpu.matmul %3, %4, %cst {dimension_numbers = #tpu.dot_dimension_numbers<[1], [0], [0], [1], [0, 0, 1, 1], [], []>} : vector<32x32xbf16>, vector<32x256xbf16>, vector<32x256xf32> -> vector<32x256xf32>
    %c0_4 = arith.constant 0 : index
    %c0_5 = arith.constant 0 : index
    %6 = vector.load %arg6[%c0_4, %c0_5] : memref<1x256xf32, #tpu.memory_space<vmem>>, vector<1x256xf32>
    %7 = vector.broadcast %6 : vector<1x256xf32> to vector<32x256xf32>
    %8 = arith.addf %5, %7 : vector<32x256xf32>
    %9 = arith.truncf %8 : vector<32x256xf32> to vector<32x256xbf16>
    %c0_6 = arith.constant 0 : index
    %c0_7 = arith.constant 0 : index
    %10 = vector.load %arg7[%c0_6, %c0_7] : memref<32x256xbf16, #tpu.memory_space<vmem>>, vector<32x256xbf16>
    tpu.vector_store %arg7[%c0_6, %c0_7], %9 {strides = array<i32>} : memref<32x256xbf16, #tpu.memory_space<vmem>>, vector<32x256xbf16>,
    return
  }
  func.func @transform_0(%arg0: i32, %arg1: i32) -> (i32, i32) {
    %c0_i32 = arith.constant 0 : i32
    %c0_i32_0 = arith.constant 0 : i32
    return %arg0, %c0_i32 : i32, i32
  }
  func.func @transform_1(%arg0: i32, %arg1: i32) -> (i32, i32) {
    %c0_i32 = arith.constant 0 : i32
    %c0_i32_0 = arith.constant 0 : i32
    %c0_i32_1 = arith.constant 0 : i32
    return %c0_i32, %c0_i32_0 : i32, i32
  }
  func.func @transform_2(%arg0: i32, %arg1: i32) -> (i32, i32) {
    %c0_i32 = arith.constant 0 : i32
    %c0_i32_0 = arith.constant 0 : i32
    %c0_i32_1 = arith.constant 0 : i32
    return %c0_i32, %c0_i32_0 : i32, i32
  }
  func.func @transform_3(%arg0: i32, %arg1: i32) -> (i32, i32) {
    %c0_i32 = arith.constant 0 : i32
    %c0_i32_0 = arith.constant 0 : i32
    return %c0_i32, %arg1 : i32, i32
  }
  func.func @transform_4(%arg0: i32, %arg1: i32) -> (i32, i32) {
    %c0_i32 = arith.constant 0 : i32
    %c0_i32_0 = arith.constant 0 : i32
    return %c0_i32, %arg1 : i32, i32
  }
  func.func @transform_5(%arg0: i32, %arg1: i32) -> (i32, i32) {
    %c0_i32 = arith.constant 0 : i32
    return %arg0, %arg1 : i32, i32
  }
}

</mosaic_0001>

<llo_original>
// kernel: tpu_custom_call.1
$region0: #{tpu_custom_call.1}
  #allocation0 [shape = 'u32[]', space=smem, size = 0x4, offset = 0x4, fixed_abs, tag = 'smem constant byte address 0x4 - core index']
  #allocation1 [shape = 'u32[72,128]{1,0:T(1,128)}', space=vmem, size = 0x9000, scoped, tag = 'internal scratch']
  #allocation2 [shape = 'bf16[32,32]{1,0:T(8,128)(2,1)}', space=vmem, size = 0x2000, scoped, tag = 'scratch operand']
  %s0 = inlined_call_operand.vmem [shape: f32[64,32], index: 0, kind: input, shape index: {}]
  %s1 = inlined_call_operand.vmem [shape: f32[8,32], index: 1, kind: input, shape index: {}]
  %s2 = inlined_call_operand.vmem [shape: bf16[32,32], index: 2, kind: input, shape index: {}]
  %s3 = inlined_call_operand.vmem [shape: bf16[32,512], index: 3, kind: input, shape index: {}]
  %s4 = inlined_call_operand.vmem [shape: f32[1,512], index: 4, kind: input, shape index: {}]
  %s5 = inlined_call_operand.hbm [shape: bf16[64,512], index: 5, kind: output, shape index: {}]
  %s6 = sld [smem:[#allocation0]]
  $region95: #{tpu_custom_call.1} parent=0
    _
  %s8 = ssub.s32 1, %s6
  %s9 = scalar_select 0, %s8, %s6
  $region1: #{tpu_custom_call.1} parent=0
    #allocation3 [shape = 'u8[32768]{0}', space=vmem, size = 0x8000, scoped, tag = 'input window, operand 3']
    #allocation4 [shape = 'u8[32768]{0}', space=vmem, size = 0x8000, scoped, tag = 'output window, operand 0']
    #allocation5 [shape = 's32[2]{0}', space=sflag, size = 0x8, scoped, tag = 'scoped memory for tpu_custom_call.1']
    %10 = vsyncpa [#allocation5], 0
    %s11 = scalar_lea.sflag [#allocation5], 1
    %12 = vsyncpa %s11, 0
    loop: start=0, step=1, limit=6
    $region2: #{tpu_custom_call.1} parent=1 // loop_pre_header
      _
    $region3: #{tpu_custom_call.1} parent=1 // loop_header
      %s14 = sphi 0, %s18
      %p15 = scmp.ge.s32.totalorder %s14, 6
      %s21 = sphi 0, %s33
      %s22 = sphi 0, %s29
      %s23 = sphi 0, %s21
      %s24 = sphi 0, %s22
      %s25 = sphi 0, %s23
      %s26 = sphi 0, %s24
      %s36 = sphi 0, %s38
      %s39 = sphi 0, %s36
      %s40 = sphi 0, %s39
      %s56 = sphi 0, %s40
      %s60 = sphi 0, %s60
      %s62 = sphi 0, %s60
      %s63 = sphi 0, %s62
      %s77 = sphi 0, %s63
      %s81 = sphi 0, %s81
      %s83 = sphi 0, %s81
      %s84 = sphi 0, %s83
      %s98 = sphi 0, %s84
      %s104 = sphi 0, %s106
      %s107 = sphi 0, %s104
      %s108 = sphi 0, %s107
      %s124 = sphi 0, %s108
      %s130 = sphi 0, %s132
      %s133 = sphi 0, %s130
      %s134 = sphi 0, %s133
      %s150 = sphi 0, %s134
      %s158 = sphi 0, %s160
      %s161 = sphi 0, %s158
      %s162 = sphi 0, %s161
      %s178 = sphi 0, %s162
    $region4: #{tpu_custom_call.1} parent=1 // loop_header_branch
      %17 = sbr.rel (%p15) target = $region8
    $region5: #{tpu_custom_call.1} parent=1 // loop_body
      %s19 = ssub.s32 %s14, 1
      %s20 = ssub.s32 %s14, 2
      %s27 = sadd.s32 1, %s22
      %p28 = scmp.ge.s32.totalorder %s27, 2
      %s29 = scalar_select %p28, 0, %s27
      %s30 = sadd.s32 1, %s21
      %s31 = scalar_select %p28, %s30, %s21
      %p32 = scmp.ge.s32.totalorder %s31, 2
      %s33 = scalar_select %p32, 0, %s31
      %s34 = ssub.s32 %s21, %s33
      %p35 = scmp.eq.s32.totalorder %s34, 0
      %s37 = sadd.s32 %s36, 1
      %s38 = scalar_select %p35, %s36, %s37
      %p41 = pneg %p35
      %p42 = scmp.eq.s32.totalorder %s14, 3
      %p43 = por %p41, %p42
      %p44 = scmp.ne.s32.totalorder %s36, %s39
      %p45 = scmp.eq.s32.totalorder %s14, 0
      %p46 = por %p44, %p45
      %p47 = scmp.ne.s32.totalorder %s36, %s39
      %p48 = scmp.eq.s32.totalorder %s19, 3
      %p49 = por %p47, %p48
      %p50 = scmp.ne.s32.totalorder %s39, %s40
      %p51 = scmp.eq.s32.totalorder %s19, 0
      %p52 = por %p50, %p51
      %p53 = scmp.ne.s32.totalorder %s39, %s40
      %p54 = scmp.eq.s32.totalorder %s20, 3
      %p55 = por %p53, %p54
      %p57 = scmp.ne.s32.totalorder %s40, %s56
      %p58 = scmp.eq.s32.totalorder %s20, 0
      %p59 = por %p57, %p58
      %s61 = sadd.s32 %s60, 1
      %p64 = scmp.eq.s32.totalorder %s14, 3
      %p65 = scmp.ne.s32.totalorder %s60, %s62
      %p66 = scmp.eq.s32.totalorder %s14, 0
      %p67 = por %p65, %p66
      %p68 = scmp.ne.s32.totalorder %s60, %s62
      %p69 = scmp.eq.s32.totalorder %s19, 3
      %p70 = por %p68, %p69
      %p71 = scmp.ne.s32.totalorder %s62, %s63
      %p72 = scmp.eq.s32.totalorder %s19, 0
      %p73 = por %p71, %p72
      %p74 = scmp.ne.s32.totalorder %s62, %s63
      %p75 = scmp.eq.s32.totalorder %s20, 3
      %p76 = por %p74, %p75
      %p78 = scmp.ne.s32.totalorder %s63, %s77
      %p79 = scmp.eq.s32.totalorder %s20, 0
      %p80 = por %p78, %p79
      %s82 = sadd.s32 %s81, 1
      %p85 = scmp.eq.s32.totalorder %s14, 3
      %p86 = scmp.ne.s32.totalorder %s81, %s83
      %p87 = scmp.eq.s32.totalorder %s14, 0
      %p88 = por %p86, %p87
      %p89 = scmp.ne.s32.totalorder %s81, %s83
      %p90 = scmp.eq.s32.totalorder %s19, 3
      %p91 = por %p89, %p90
      %p92 = scmp.ne.s32.totalorder %s83, %s84
      %p93 = scmp.eq.s32.totalorder %s19, 0
      %p94 = por %p92, %p93
      %p95 = scmp.ne.s32.totalorder %s83, %s84
      %p96 = scmp.eq.s32.totalorder %s20, 3
      %p97 = por %p95, %p96
      %p99 = scmp.ne.s32.totalorder %s84, %s98
      %p100 = scmp.eq.s32.totalorder %s20, 0
      %p101 = por %p99, %p100
      %s102 = ssub.s32 %s22, %s29
      %p103 = scmp.eq.s32.totalorder %s102, 0
      %s105 = sadd.s32 %s104, 1
      %s106 = scalar_select %p103, %s104, %s105
      %p109 = pneg %p103
      %p110 = scmp.eq.s32.totalorder %s14, 3
      %p111 = por %p109, %p110
      %p112 = scmp.ne.s32.totalorder %s104, %s107
      %p113 = scmp.eq.s32.totalorder %s14, 0
      %p114 = por %p112, %p113
      %p115 = scmp.ne.s32.totalorder %s104, %s107
      %p116 = scmp.eq.s32.totalorder %s19, 3
      %p117 = por %p115, %p116
      %p118 = scmp.ne.s32.totalorder %s107, %s108
      %p119 = scmp.eq.s32.totalorder %s19, 0
      %p120 = por %p118, %p119
      %p121 = scmp.ne.s32.totalorder %s107, %s108
      %p122 = scmp.eq.s32.totalorder %s20, 3
      %p123 = por %p121, %p122
      %p125 = scmp.ne.s32.totalorder %s108, %s124
      %p126 = scmp.eq.s32.totalorder %s20, 0
      %p127 = por %p125, %p126
      %s128 = ssub.s32 %s22, %s29
      %p129 = scmp.eq.s32.totalorder %s128, 0
      %s131 = sadd.s32 %s130, 1
      %s132 = scalar_select %p129, %s130, %s131
      %p135 = pneg %p129
      %p136 = scmp.eq.s32.totalorder %s14, 3
      %p137 = por %p135, %p136
      %p138 = scmp.ne.s32.totalorder %s130, %s133
      %p139 = scmp.eq.s32.totalorder %s14, 0
      %p140 = por %p138, %p139
      %p141 = scmp.ne.s32.totalorder %s130, %s133
      %p142 = scmp.eq.s32.totalorder %s19, 3
      %p143 = por %p141, %p142
      %p144 = scmp.ne.s32.totalorder %s133, %s134
      %p145 = scmp.eq.s32.totalorder %s19, 0
      %p146 = por %p144, %p145
      %p147 = scmp.ne.s32.totalorder %s133, %s134
      %p148 = scmp.eq.s32.totalorder %s20, 3
      %p149 = por %p147, %p148
      %p151 = scmp.ne.s32.totalorder %s134, %s150
      %p152 = scmp.eq.s32.totalorder %s20, 0
      %p153 = por %p151, %p152
      %s154 = ssub.s32 %s21, %s33
      %s155 = ssub.s32 %s22, %s29
      %s156 = sor.u32 %s154, %s155
      %p157 = scmp.eq.s32.totalorder %s156, 0
      %s159 = sadd.s32 %s158, 1
      %s160 = scalar_select %p157, %s158, %s159
      %p163 = pneg %p157
      %p164 = scmp.eq.s32.totalorder %s14, 3
      %p165 = por %p163, %p164
      %p166 = scmp.ne.s32.totalorder %s158, %s161
      %p167 = scmp.eq.s32.totalorder %s14, 0
      %p168 = por %p166, %p167
      %p169 = scmp.ne.s32.totalorder %s158, %s161
      %p170 = scmp.eq.s32.totalorder %s19, 3
      %p171 = por %p169, %p170
      %p172 = scmp.ne.s32.totalorder %s161, %s162
      %p173 = scmp.eq.s32.totalorder %s19, 0
      %p174 = por %p172, %p173
      %p175 = scmp.ne.s32.totalorder %s161, %s162
      %p176 = scmp.eq.s32.totalorder %s20, 3
      %p177 = por %p175, %p176
      %p179 = scmp.ne.s32.totalorder %s162, %s178
      %p180 = scmp.eq.s32.totalorder %s20, 0
      %p181 = por %p179, %p180
      %p182 = scmp.le.s32.totalorder 1, %s14
      %p183 = scmp.lt.s32.totalorder %s14, 5
      %p184 = pnand %p182, %p183
      %p185 = pneg %p184
      // Predicated region
      $region9: #{tpu_custom_call.1} parent=5 // pred_check
        _
      $region10: #{tpu_custom_call.1} parent=5 // pred_check_branch
        %187 = sbr.rel (%p184) target = $region12
      $region11: #{tpu_custom_call.1} parent=5 // pred_region
        %s188 = ssub.s32 %s14, 1
        // Predicated region
        $region13: #{tpu_custom_call.1} parent=11 // pred_check
          %p189 = pneg %p73
        $region14: #{tpu_custom_call.1} parent=11 // pred_check_branch
          %191 = sbr.rel (%p189) target = $region16
        $region15: #{tpu_custom_call.1} parent=11 // pred_region
          _
        $region16: #{tpu_custom_call.1} parent=11 // pred_fallthru
          _
        // Predicated region
        $region17: #{tpu_custom_call.1} parent=11 // pred_check
          %p192 = pneg %p94
        $region18: #{tpu_custom_call.1} parent=11 // pred_check_branch
          %194 = sbr.rel (%p192) target = $region20
        $region19: #{tpu_custom_call.1} parent=11 // pred_region
          _
        $region20: #{tpu_custom_call.1} parent=11 // pred_fallthru
          _
      $region12: #{tpu_custom_call.1} parent=5 // pred_fallthru
        _
      %p195 = scmp.lt.s32.totalorder %s14, 4
      // Predicated region
      $region21: #{tpu_custom_call.1} parent=5 // pred_check
        %p196 = pneg %p195
      $region22: #{tpu_custom_call.1} parent=5 // pred_check_branch
        %198 = sbr.rel (%p196) target = $region24
      $region23: #{tpu_custom_call.1} parent=5 // pred_region
        // Predicated region
        $region25: #{tpu_custom_call.1} parent=23 // pred_check
          %p199 = pneg %p46
        $region26: #{tpu_custom_call.1} parent=23 // pred_check_branch
          %201 = sbr.rel (%p199) target = $region28
        $region27: #{tpu_custom_call.1} parent=23 // pred_region
          %s202 = smul.u32 4, %s21
          %p203 = scmp.lt.s32.totalorder %s202, 7
          %s204 = scalar_select %p203, %s202, 7
          %s205 = smul.addr %s204, 8
          %s206 = scalar_lea.vmem %s0, %s205
          %s207 = smul.u32 4, %s21
        $region28: #{tpu_custom_call.1} parent=23 // pred_fallthru
          _
        // Predicated region
        $region29: #{tpu_custom_call.1} parent=23 // pred_check
          %p208 = pneg %p114
        $region30: #{tpu_custom_call.1} parent=23 // pred_check_branch
          %210 = sbr.rel (%p208) target = $region32
        $region31: #{tpu_custom_call.1} parent=23 // pred_region
          %s211 = sand.u32 %s104, 1
          %s212 = sand.u32 %s104, 1
          %s213 = smul.addr %s212, 32
          %s214 = scalar_lea.vmem [#allocation3], %s213
          %s215 = smul.u32 2, %s22
          %s216 = smul.addr %s215, 4
          %s217 = scalar_lea.vmem %s3, %s216
          // Predicated region
          $region33: #{tpu_custom_call.1} parent=31 // pred_check
            _
          $region34: #{tpu_custom_call.1} parent=31 // pred_check_branch
            %219 = sbr.rel (0) target = $region36
          $region35: #{tpu_custom_call.1} parent=31 // pred_region
            // Predicated region
            $region37: #{tpu_custom_call.1} parent=35 // pred_check
              _
            $region38: #{tpu_custom_call.1} parent=35 // pred_check_branch
              %221 = sbr.rel (0) target = $region40
            $region39: #{tpu_custom_call.1} parent=35 // pred_region
              // Predicated region
              $region52: #{tpu_custom_call.1} parent=39 // pred_check
                _
              $region53: #{tpu_custom_call.1} parent=39 // pred_check_branch
                %243 = sbr.rel (0) target = $region55
              $region54: #{tpu_custom_call.1} parent=39 // pred_region
                loop: start=0, step=1, limit=1
                $region56: #{tpu_custom_call.1} parent=54 // loop_pre_header
                  _
                $region57: #{tpu_custom_call.1} parent=54 // loop_header
                  %s245 = sphi 0, %s249
                  %p246 = scmp.ge.s32.totalorder %s245, 1
                  %s250 = sphi %s217, %s217
                  %s251 = sphi %s214, %s214
                $region58: #{tpu_custom_call.1} parent=54 // loop_header_branch
                  %248 = sbr.rel (%p246) target = $region62
                $region59: #{tpu_custom_call.1} parent=54 // loop_body
                  %v252 = vld [vmem:[%s250] sm:$0xff]
                  %253 = vst [vmem:[%s251] sm:$0xff] %v252
                  %v254 = vld [vmem:[%s250 + $0x10] sm:$0xff]
                  %255 = vst [vmem:[%s251 + $0x8] sm:$0xff] %v254
                  %v256 = vld [vmem:[%s250 + $0x20] sm:$0xff]
                  %257 = vst [vmem:[%s251 + $0x10] sm:$0xff] %v256
                  %v258 = vld [vmem:[%s250 + $0x30] sm:$0xff]
                  %259 = vst [vmem:[%s251 + $0x18] sm:$0xff] %v258
                $region60: #{tpu_custom_call.1} parent=54 // loop_footer
                  %s249 = sadd.s32 1, %s245
                $region61: #{tpu_custom_call.1} parent=54 // loop_footer_branch
                  %244 = sbr.rel target = $region57
                $region62: #{tpu_custom_call.1} parent=54 // loop_exit
                  _
              $region55: #{tpu_custom_call.1} parent=39 // pred_fallthru
                _
              // Predicated region
              $region63: #{tpu_custom_call.1} parent=39 // pred_check
                _
              $region64: #{tpu_custom_call.1} parent=39 // pred_check_branch
                %261 = sbr.rel target = $region66
              $region65: #{tpu_custom_call.1} parent=39 // pred_region
                _
              $region66: #{tpu_custom_call.1} parent=39 // pred_fallthru
                _
            $region40: #{tpu_custom_call.1} parent=35 // pred_fallthru
              _
            // Predicated region
            $region41: #{tpu_custom_call.1} parent=35 // pred_check
              _
            $region42: #{tpu_custom_call.1} parent=35 // pred_check_branch
              %223 = sbr.rel target = $region44
            $region43: #{tpu_custom_call.1} parent=35 // pred_region
              %s225 = ssub.s32 256, 1
              loop: start=0, step=1, limit=1
              $region45: #{tpu_custom_call.1} parent=43 // loop_pre_header
                _
              $region46: #{tpu_custom_call.1} parent=43 // loop_header
                %s227 = sphi 0, %s231
                %p228 = scmp.ge.s32.totalorder %s227, 1
                %s232 = sphi %s217, %s217
                %s233 = sphi %s214, %s214
              $region47: #{tpu_custom_call.1} parent=43 // loop_header_branch
                %230 = sbr.rel (%p228) target = $region51
              $region48: #{tpu_custom_call.1} parent=43 // loop_body
                %v234 = vld [vmem:[%s232] sm:%s225]
                %235 = vst [vmem:[%s233] sm:%s225] %v234
                %v236 = vld [vmem:[%s232 + $0x10] sm:%s225]
                %237 = vst [vmem:[%s233 + $0x8] sm:%s225] %v236
                %v238 = vld [vmem:[%s232 + $0x20] sm:%s225]
                %239 = vst [vmem:[%s233 + $0x10] sm:%s225] %v238
                %v240 = vld [vmem:[%s232 + $0x30] sm:%s225]
                %241 = vst [vmem:[%s233 + $0x18] sm:%s225] %v240
              $region49: #{tpu_custom_call.1} parent=43 // loop_footer
                %s231 = sadd.s32 1, %s227
              $region50: #{tpu_custom_call.1} parent=43 // loop_footer_branch
                %226 = sbr.rel target = $region46
              $region51: #{tpu_custom_call.1} parent=43 // loop_exit
                _
            $region44: #{tpu_custom_call.1} parent=35 // pred_fallthru
              _
          $region36: #{tpu_custom_call.1} parent=31 // pred_fallthru
            _
          %262 = vnop
        $region32: #{tpu_custom_call.1} parent=23 // pred_fallthru
          _
        // Predicated region
        $region67: #{tpu_custom_call.1} parent=23 // pred_check
          %p263 = pneg %p140
        $region68: #{tpu_custom_call.1} parent=23 // pred_check_branch
          %265 = sbr.rel (%p263) target = $region70
        $region69: #{tpu_custom_call.1} parent=23 // pred_region
          %s266 = smul.u32 2, %s22
          %p267 = scmp.lt.s32.totalorder %s266, 3
          %s268 = scalar_select %p267, %s266, 3
          %s269 = scalar_lea.vmem %s4, %s268
          %s270 = smul.u32 2, %s22
        $region70: #{tpu_custom_call.1} parent=23 // pred_fallthru
          _
      $region24: #{tpu_custom_call.1} parent=5 // pred_fallthru
        _
      %p271 = scmp.le.s32.totalorder 1, %s14
      %p272 = scmp.lt.s32.totalorder %s14, 5
      %p273 = pnand %p271, %p272
      %p274 = pneg %p273
      // Predicated region
      $region71: #{tpu_custom_call.1} parent=5 // pred_check
        _
      $region72: #{tpu_custom_call.1} parent=5 // pred_check_branch
        %276 = sbr.rel (%p273) target = $region74
      $region73: #{tpu_custom_call.1} parent=5 // pred_region
        %s277 = ssub.s32 %s14, 1
        %s278 = sand.u32 %s107, 1
        %s279 = sand.u32 %s107, 1
        %s280 = smul.addr %s279, 32
        %s281 = scalar_lea.vmem [#allocation3], %s280
        // Predicated region
        $region75: #{tpu_custom_call.1} parent=73 // pred_check
          %p282 = pneg %p120
        $region76: #{tpu_custom_call.1} parent=73 // pred_check_branch
          %284 = sbr.rel (%p282) target = $region78
        $region77: #{tpu_custom_call.1} parent=73 // pred_region
          _
        $region78: #{tpu_custom_call.1} parent=73 // pred_fallthru
          _
        %s285 = smul.u32 4, %s23
        %p286 = scmp.lt.s32.totalorder %s285, 7
        %s287 = scalar_select %p286, %s285, 7
        %s288 = smul.addr %s287, 8
        %s289 = scalar_lea.vmem %s0, %s288
        %p290 = pneg %p52
        %p291 = pneg %p49
        %p292 = pneg %p73
        %p293 = pneg %p70
        %p294 = pneg %p94
        %p295 = pneg %p91
        %s296 = sand.u32 %s107, 1
        %s297 = sand.u32 %s107, 1
        %s298 = smul.addr %s297, 32
        %s299 = scalar_lea.vmem [#allocation3], %s298
        %p300 = pneg %p120
        %p301 = pneg %p117
        %s302 = smul.u32 2, %s24
        %p303 = scmp.lt.s32.totalorder %s302, 3
        %s304 = scalar_select %p303, %s302, 3
        %s305 = scalar_lea.vmem %s4, %s304
        %p306 = pneg %p146
        %p307 = pneg %p143
        %p308 = pneg %p174
        %p309 = pneg %p171
        %s310 = sand.u32 %s161, 1
        %s311 = scalar_lea.sflag [#allocation5], %s310
        %s312 = sand.u32 %s161, 1
        %s313 = smul.addr %s312, 32
        %s314 = scalar_lea.vmem [#allocation4], %s313
        %s315 = smul.u32 4, %s23
        %p316 = scmp.lt.s32.totalorder %s315, 7
        %s317 = scalar_select %p316, %s315, 7
        %s318 = smul.addr %s317, 8
        %s319 = scalar_lea.vmem %s0, %s318
        %s320 = smul.u32 4, %s23
        %s321 = smul.u32 2, %s24
        %s322 = smul.u32 2, %s24
        %p323 = scmp.lt.s32.totalorder %s322, 3
        %s324 = scalar_select %p323, %s322, 3
        %s325 = scalar_lea.vmem %s4, %s324
        %s326 = smul.u32 2, %s24
        %s327 = smul.u32 4, %s23
        %s328 = smul.u32 2, %s24
        %p330 = scmp.eq.s32.totalorder %s24, 0
        // Predicated region
        $region79: #{tpu_custom_call.1} parent=73 // pred_check
          %p331 = pneg %p330
        $region80: #{tpu_custom_call.1} parent=73 // pred_check_branch
          %333 = sbr.rel (%p331) target = $region82
        $region81: #{tpu_custom_call.1} parent=73 // pred_region
          %v334 = vld [vmem:[%s1] sm:$0xff]
          %v335 = vld [vmem:[%s319] sm:$0xff]
          %v336 = vld [vmem:[%s319 + $0x8] sm:$0xff]
          %v337 = vld [vmem:[%s319 + $0x10] sm:$0xff]
          %v338 = vld [vmem:[%s319 + $0x18] sm:$0xff]
          %v339 = vmul.f32 %v335, 0.5
          %v340 = vmul.f32 %v336, 0.5
          %v341 = vmul.f32 %v337, 0.5
          %v342 = vmul.f32 %v338, 0.5
          %v343 = vrcp.pop 1.4142135
          %v344 = vmul.f32 1.4142135, %v343
          %v345 = vsub.f32 1.0, %v344
          %v346 = vmul.f32 %v343, %v345
          %v347 = vadd.f32 %v343, %v346
          %vm348 = vweird.f32 %v343
          %v349 = vsel %vm348, %v343, %v347
          %v350 = vmul.f32 %v335, %v349
          %v351 = vmul.f32 %v336, %v349
          %v352 = vmul.f32 %v337, %v349
          %v353 = vmul.f32 %v338, %v349
          %v354 = vmul.f32 %v350, %v350
          %v355 = vmin.f32 16.0, %v354
          %v356 = vmul.f32 %v355, 2.1237322e-06
          %v357 = vadd.f32 %v356, 0.00028619796
          %v358 = vmul.f32 %v355, %v357
          %v359 = vadd.f32 %v358, 0.0036580483
          %v360 = vmul.f32 %v355, %v359
          %v361 = vadd.f32 %v360, 0.05243302
          %v362 = vmul.f32 %v355, %v361
          %v363 = vadd.f32 %v362, 0.18741608
          %v364 = vmul.f32 %v355, %v363
          %v365 = vadd.f32 %v364, 1.1283791
          %v366 = vmul.f32 %v350, %v365
          %v367 = vmul.f32 %v355, 3.8918573e-05
          %v368 = vadd.f32 %v367, 0.001143296
          %v369 = vmul.f32 %v355, %v368
          %v370 = vadd.f32 %v369, 0.014752088
          %v371 = vmul.f32 %v355, %v370
          %v372 = vadd.f32 %v371, 0.112945676
          %v373 = vmul.f32 %v355, %v372
          %v374 = vadd.f32 %v373, 0.4994258
          %v375 = vmul.f32 %v355, %v374
          %v376 = vadd.f32 %v375, 1.0
          %v377 = vrcp.pop %v376
          %v378 = vmul.f32 %v376, %v377
          %v379 = vsub.f32 1.0, %v378
          %v380 = vmul.f32 %v377, %v379
          %v381 = vadd.f32 %v377, %v380
          %vm382 = vweird.f32 %v376
          %vm383 = vweird.f32 %v377
          %vm384 = vmor %vm382, %vm383
          %v385 = vsel %vm384, %v377, %v381
          %v386 = vand.u32 2147483647, %v376
          %vm387 = vcmp.eq.f32.partialorder %v386, 8.507059e+37
          %v388 = vand.u32 %v376, 2147483648
          %v389 = vor.u32 1.1754944e-38, %v388
          %v390 = vsel %vm387, %v389, %v385
          %v391 = vmul.f32 %v366, %v390
          %v392 = vmin.f32 %v391, 1.0
          %v393 = vmax.f32 %v392, -1.0
          %v394 = vmul.f32 %v351, %v351
          %v395 = vmin.f32 16.0, %v394
          %v396 = vmul.f32 %v395, 2.1237322e-06
          %v397 = vadd.f32 %v396, 0.00028619796
          %v398 = vmul.f32 %v395, %v397
          %v399 = vadd.f32 %v398, 0.0036580483
          %v400 = vmul.f32 %v395, %v399
          %v401 = vadd.f32 %v400, 0.05243302
          %v402 = vmul.f32 %v395, %v401
          %v403 = vadd.f32 %v402, 0.18741608
          %v404 = vmul.f32 %v395, %v403
          %v405 = vadd.f32 %v404, 1.1283791
          %v406 = vmul.f32 %v351, %v405
          %v407 = vmul.f32 %v395, 3.8918573e-05
          %v408 = vadd.f32 %v407, 0.001143296
          %v409 = vmul.f32 %v395, %v408
          %v410 = vadd.f32 %v409, 0.014752088
          %v411 = vmul.f32 %v395, %v410
          %v412 = vadd.f32 %v411, 0.112945676
          %v413 = vmul.f32 %v395, %v412
          %v414 = vadd.f32 %v413, 0.4994258
          %v415 = vmul.f32 %v395, %v414
          %v416 = vadd.f32 %v415, 1.0
          %v417 = vrcp.pop %v416
          %v418 = vmul.f32 %v416, %v417
          %v419 = vsub.f32 1.0, %v418
          %v420 = vmul.f32 %v417, %v419
          %v421 = vadd.f32 %v417, %v420
          %vm422 = vweird.f32 %v416
          %vm423 = vweird.f32 %v417
          %vm424 = vmor %vm422, %vm423
          %v425 = vsel %vm424, %v417, %v421
          %v426 = vand.u32 2147483647, %v416
          %vm427 = vcmp.eq.f32.partialorder %v426, 8.507059e+37
          %v428 = vand.u32 %v416, 2147483648
          %v429 = vor.u32 1.1754944e-38, %v428
          %v430 = vsel %vm427, %v429, %v425
          %v431 = vmul.f32 %v406, %v430
          %v432 = vmin.f32 %v431, 1.0
          %v433 = vmax.f32 %v432, -1.0
          %v434 = vmul.f32 %v352, %v352
          %v435 = vmin.f32 16.0, %v434
          %v436 = vmul.f32 %v435, 2.1237322e-06
          %v437 = vadd.f32 %v436, 0.00028619796
          %v438 = vmul.f32 %v435, %v437
          %v439 = vadd.f32 %v438, 0.0036580483
          %v440 = vmul.f32 %v435, %v439
          %v441 = vadd.f32 %v440, 0.05243302
          %v442 = vmul.f32 %v435, %v441
          %v443 = vadd.f32 %v442, 0.18741608
          %v444 = vmul.f32 %v435, %v443
          %v445 = vadd.f32 %v444, 1.1283791
          %v446 = vmul.f32 %v352, %v445
          %v447 = vmul.f32 %v435, 3.8918573e-05
          %v448 = vadd.f32 %v447, 0.001143296
          %v449 = vmul.f32 %v435, %v448
          %v450 = vadd.f32 %v449, 0.014752088
          %v451 = vmul.f32 %v435, %v450
          %v452 = vadd.f32 %v451, 0.112945676
          %v453 = vmul.f32 %v435, %v452
          %v454 = vadd.f32 %v453, 0.4994258
          %v455 = vmul.f32 %v435, %v454
          %v456 = vadd.f32 %v455, 1.0
          %v457 = vrcp.pop %v456
          %v458 = vmul.f32 %v456, %v457
          %v459 = vsub.f32 1.0, %v458
          %v460 = vmul.f32 %v457, %v459
          %v461 = vadd.f32 %v457, %v460
          %vm462 = vweird.f32 %v456
          %vm463 = vweird.f32 %v457
          %vm464 = vmor %vm462, %vm463
          %v465 = vsel %vm464, %v457, %v461
          %v466 = vand.u32 2147483647, %v456
          %vm467 = vcmp.eq.f32.partialorder %v466, 8.507059e+37
          %v468 = vand.u32 %v456, 2147483648
          %v469 = vor.u32 1.1754944e-38, %v468
          %v470 = vsel %vm467, %v469, %v465
          %v471 = vmul.f32 %v446, %v470
          %v472 = vmin.f32 %v471, 1.0
          %v473 = vmax.f32 %v472, -1.0
          %v474 = vmul.f32 %v353, %v353
          %v475 = vmin.f32 16.0, %v474
          %v476 = vmul.f32 %v475, 2.1237322e-06
          %v477 = vadd.f32 %v476, 0.00028619796
          %v478 = vmul.f32 %v475, %v477
          %v479 = vadd.f32 %v478, 0.0036580483
          %v480 = vmul.f32 %v475, %v479
          %v481 = vadd.f32 %v480, 0.05243302
          %v482 = vmul.f32 %v475, %v481
          %v483 = vadd.f32 %v482, 0.18741608
          %v484 = vmul.f32 %v475, %v483
          %v485 = vadd.f32 %v484, 1.1283791
          %v486 = vmul.f32 %v353, %v485
          %v487 = vmul.f32 %v475, 3.8918573e-05
          %v488 = vadd.f32 %v487, 0.001143296
          %v489 = vmul.f32 %v475, %v488
          %v490 = vadd.f32 %v489, 0.014752088
          %v491 = vmul.f32 %v475, %v490
          %v492 = vadd.f32 %v491, 0.112945676
          %v493 = vmul.f32 %v475, %v492
          %v494 = vadd.f32 %v493, 0.4994258
          %v495 = vmul.f32 %v475, %v494
          %v496 = vadd.f32 %v495, 1.0
          %v497 = vrcp.pop %v496
          %v498 = vmul.f32 %v496, %v497
          %v499 = vsub.f32 1.0, %v498
          %v500 = vmul.f32 %v497, %v499
          %v501 = vadd.f32 %v497, %v500
          %vm502 = vweird.f32 %v496
          %vm503 = vweird.f32 %v497
          %vm504 = vmor %vm502, %vm503
          %v505 = vsel %vm504, %v497, %v501
          %v506 = vand.u32 2147483647, %v496
          %vm507 = vcmp.eq.f32.partialorder %v506, 8.507059e+37
          %v508 = vand.u32 %v496, 2147483648
          %v509 = vor.u32 1.1754944e-38, %v508
          %v510 = vsel %vm507, %v509, %v505
          %v511 = vmul.f32 %v486, %v510
          %v512 = vmin.f32 %v511, 1.0
          %v513 = vmax.f32 %v512, -1.0
          %v514 = vadd.f32 %v393, 1.0
          %v515 = vadd.f32 %v433, 1.0
          %v516 = vadd.f32 %v473, 1.0
          %v517 = vadd.f32 %v513, 1.0
          %v518 = vmul.f32 %v339, %v514
          %v519 = vmul.f32 %v340, %v515
          %v520 = vmul.f32 %v341, %v516
          %v521 = vmul.f32 %v342, %v517
          %vm522 = vcmask 261120
          %v523 = vsel %vm522, %v518, 0.0
          %524 = vadd.xlane.f32.xlu0 %v523
          %v525 = vpop.xlane.xlu0 %524
          %v526 = vsel %vm522, %v519, 0.0
          %527 = vadd.xlane.f32.xlu0 %v526
          %v528 = vpop.xlane.xlu0 %527
          %v529 = vsel %vm522, %v520, 0.0
          %530 = vadd.xlane.f32.xlu0 %v529
          %v531 = vpop.xlane.xlu0 %530
          %v532 = vsel %vm522, %v521, 0.0
          %533 = vadd.xlane.f32.xlu0 %v532
          %v534 = vpop.xlane.xlu0 %533
          %v535 = vrcp.pop 32.0
          %v536 = vmul.f32 32.0, %v535
          %v537 = vsub.f32 1.0, %v536
          %v538 = vmul.f32 %v535, %v537
          %v539 = vadd.f32 %v535, %v538
          %vm540 = vweird.f32 %v535
          %v541 = vsel %vm540, %v535, %v539
          %v542 = vmul.f32 %v525, %v541
          %v543 = vmul.f32 %v528, %v541
          %v544 = vmul.f32 %v531, %v541
          %v545 = vmul.f32 %v534, %v541
          %v546 = vsub.f32 %v518, %v542
          %v547 = vsub.f32 %v519, %v543
          %v548 = vsub.f32 %v520, %v544
          %v549 = vsub.f32 %v521, %v545
          %v550 = vmul.f32 %v546, %v546
          %v551 = vmul.f32 %v547, %v547
          %v552 = vmul.f32 %v548, %v548
          %v553 = vmul.f32 %v549, %v549
          %v554 = vsel %vm522, %v550, 0.0
          %555 = vadd.xlane.f32.xlu0 %v554
          %v556 = vpop.xlane.xlu0 %555
          %v557 = vsel %vm522, %v551, 0.0
          %558 = vadd.xlane.f32.xlu0 %v557
          %v559 = vpop.xlane.xlu0 %558
          %v560 = vsel %vm522, %v552, 0.0
          %561 = vadd.xlane.f32.xlu0 %v560
          %v562 = vpop.xlane.xlu0 %561
          %v563 = vsel %vm522, %v553, 0.0
          %564 = vadd.xlane.f32.xlu0 %v563
          %v565 = vpop.xlane.xlu0 %564
          %v566 = vmul.f32 %v556, %v541
          %v567 = vmul.f32 %v559, %v541
          %v568 = vmul.f32 %v562, %v541
          %v569 = vmul.f32 %v565, %v541
          %v570 = vadd.f32 %v566, 1e-12
          %v571 = vadd.f32 %v567, 1e-12
          %v572 = vadd.f32 %v568, 1e-12
          %v573 = vadd.f32 %v569, 1e-12
          %v574 = vrsqrt.pop %v570
          %v575 = vmul.f32 %v574, %v570
          %v576 = vmul.f32 %v575, %v574
          %v577 = vmul.f32 0.5, %v576
          %v578 = vsub.f32 1.5, %v577
          %v579 = vmul.f32 %v574, %v578
          %v580 = vmul.f32 %v570, %v579
          %vm581 = vcmp.eq.f32.partialorder %v570, inf
          %v582 = vsel %vm581, %v570, %v580
          %vm583 = vcmp.eq.f32.partialorder %v570, 0.0
          %v584 = vand.u32 %v570, 2147483648
          %v585 = vsel %vm583, %v584, %v582
          %v586 = vrsqrt.pop %v571
          %v587 = vmul.f32 %v586, %v571
          %v588 = vmul.f32 %v587, %v586
          %v589 = vmul.f32 0.5, %v588
          %v590 = vsub.f32 1.5, %v589
          %v591 = vmul.f32 %v586, %v590
          %v592 = vmul.f32 %v571, %v591
          %vm593 = vcmp.eq.f32.partialorder %v571, inf
          %v594 = vsel %vm593, %v571, %v592
          %vm595 = vcmp.eq.f32.partialorder %v571, 0.0
          %v596 = vand.u32 %v571, 2147483648
          %v597 = vsel %vm595, %v596, %v594
          %v598 = vrsqrt.pop %v572
          %v599 = vmul.f32 %v598, %v572
          %v600 = vmul.f32 %v599, %v598
          %v601 = vmul.f32 0.5, %v600
          %v602 = vsub.f32 1.5, %v601
          %v603 = vmul.f32 %v598, %v602
          %v604 = vmul.f32 %v572, %v603
          %vm605 = vcmp.eq.f32.partialorder %v572, inf
          %v606 = vsel %vm605, %v572, %v604
          %vm607 = vcmp.eq.f32.partialorder %v572, 0.0
          %v608 = vand.u32 %v572, 2147483648
          %v609 = vsel %vm607, %v608, %v606
          %v610 = vrsqrt.pop %v573
          %v611 = vmul.f32 %v610, %v573
          %v612 = vmul.f32 %v611, %v610
          %v613 = vmul.f32 0.5, %v612
          %v614 = vsub.f32 1.5, %v613
          %v615 = vmul.f32 %v610, %v614
          %v616 = vmul.f32 %v573, %v615
          %vm617 = vcmp.eq.f32.partialorder %v573, inf
          %v618 = vsel %vm617, %v573, %v616
          %vm619 = vcmp.eq.f32.partialorder %v573, 0.0
          %v620 = vand.u32 %v573, 2147483648
          %v621 = vsel %vm619, %v620, %v618
          %v622 = vrcp.pop %v585
          %v623 = vmul.f32 %v585, %v622
          %v624 = vsub.f32 1.0, %v623
          %v625 = vmul.f32 %v622, %v624
          %v626 = vadd.f32 %v622, %v625
          %vm627 = vweird.f32 %v585
          %vm628 = vweird.f32 %v622
          %vm629 = vmor %vm627, %vm628
          %v630 = vsel %vm629, %v622, %v626
          %v631 = vand.u32 2147483647, %v585
          %vm632 = vcmp.eq.f32.partialorder %v631, 8.507059e+37
          %v633 = vand.u32 %v585, 2147483648
          %v634 = vor.u32 1.1754944e-38, %v633
          %v635 = vsel %vm632, %v634, %v630
          %v636 = vmul.f32 %v546, %v635
          %v637 = vrcp.pop %v597
          %v638 = vmul.f32 %v597, %v637
          %v639 = vsub.f32 1.0, %v638
          %v640 = vmul.f32 %v637, %v639
          %v641 = vadd.f32 %v637, %v640
          %vm642 = vweird.f32 %v597
          %vm643 = vweird.f32 %v637
          %vm644 = vmor %vm642, %vm643
          %v645 = vsel %vm644, %v637, %v641
          %v646 = vand.u32 2147483647, %v597
          %vm647 = vcmp.eq.f32.partialorder %v646, 8.507059e+37
          %v648 = vand.u32 %v597, 2147483648
          %v649 = vor.u32 1.1754944e-38, %v648
          %v650 = vsel %vm647, %v649, %v645
          %v651 = vmul.f32 %v547, %v650
          %v652 = vrcp.pop %v609
          %v653 = vmul.f32 %v609, %v652
          %v654 = vsub.f32 1.0, %v653
          %v655 = vmul.f32 %v652, %v654
          %v656 = vadd.f32 %v652, %v655
          %vm657 = vweird.f32 %v609
          %vm658 = vweird.f32 %v652
          %vm659 = vmor %vm657, %vm658
          %v660 = vsel %vm659, %v652, %v656
          %v661 = vand.u32 2147483647, %v609
          %vm662 = vcmp.eq.f32.partialorder %v661, 8.507059e+37
          %v663 = vand.u32 %v609, 2147483648
          %v664 = vor.u32 1.1754944e-38, %v663
          %v665 = vsel %vm662, %v664, %v660
          %v666 = vmul.f32 %v548, %v665
          %v667 = vrcp.pop %v621
          %v668 = vmul.f32 %v621, %v667
          %v669 = vsub.f32 1.0, %v668
          %v670 = vmul.f32 %v667, %v669
          %v671 = vadd.f32 %v667, %v670
          %vm672 = vweird.f32 %v621
          %vm673 = vweird.f32 %v667
          %vm674 = vmor %vm672, %vm673
          %v675 = vsel %vm674, %v667, %v671
          %v676 = vand.u32 2147483647, %v621
          %vm677 = vcmp.eq.f32.partialorder %v676, 8.507059e+37
          %v678 = vand.u32 %v621, 2147483648
          %v679 = vor.u32 1.1754944e-38, %v678
          %v680 = vsel %vm677, %v679, %v675
          %v681 = vmul.f32 %v549, %v680
          %v682 = vperm.slane %v334, 0
          %v683 = vmul.f32 %v682, %v636
          %v684 = vmul.f32 %v682, %v651
          %v685 = vmul.f32 %v682, %v666
          %v686 = vmul.f32 %v682, %v681
          %v687 = vperm.slane %v334, 1
          %v688 = vadd.f32 %v683, %v687
          %v689 = vadd.f32 %v684, %v687
          %v690 = vadd.f32 %v685, %v687
          %v691 = vadd.f32 %v686, %v687
          %v692 = vpack.c.bf16 %v689, %v688
          %v693 = vpack.c.bf16 %v691, %v690
          %v694 = vld [vmem:[%s2] sm:$0xf]
          %v695 = vld [vmem:[%s2 + $0x4] sm:$0xf]
          %v696 = vld [vmem:[%s2 + $0x8] sm:$0xf]
          %v697 = vld [vmem:[%s2 + $0xc] sm:$0xf]
          %v698 = vperm.slane %v334, 2
          %v703 = vunpack.c.l.b16 %v694
          %v704 = vunpack.c.l.b16 %v695
          %v705 = vunpack.c.l.b16 %v696
          %v706 = vunpack.c.l.b16 %v697
          %v707 = vpack.c.b16 %v704, %v703
          %v708 = vpack.c.b16 %v706, %v705
          %v712 = vsel %vm522, %v692, 0
          %v715 = vsel %vm522, %v693, 0
          %717 = vmatpush.bf16.msra.mxu0 0
          %718 = vmatpush.bf16.msra.mxu0 0
          %719 = vmatpush.bf16.msra.mxu0 0
          %720 = vmatpush.bf16.msra.mxu0 0
          %721 = vmatpush.bf16.msra.mxu0 0
          %722 = vmatpush.bf16.msra.mxu0 0
          %723 = vmatpush.bf16.msra.mxu0 %v708
          %724 = vmatpush.bf16.msra.mxu0 %v707
          %725 = vmatmul.bf16.gmra.mxu0 %v712
          %v726 = vpop.f32.mrf.mxu0
          %v727 = vadd.f32 %v698, %v726
          %v728 = vpop.f32.mrf.mxu0
          %v729 = vadd.f32 %v698, %v728
          %730 = vmatmul.bf16.gmra.mxu0 %v715
          %v731 = vpop.f32.mrf.mxu0
          %v732 = vadd.f32 %v698, %v731
          %v733 = vpop.f32.mrf.mxu0
          %v734 = vadd.f32 %v698, %v733
          %735 = vdwg.mxu0
          %v736 = vmul.f32 %v727, 0.5
          %v737 = vmul.f32 %v729, 0.5
          %v738 = vmul.f32 %v732, 0.5
          %v739 = vmul.f32 %v734, 0.5
          %v740 = vmul.f32 %v727, %v349
          %v741 = vmul.f32 %v729, %v349
          %v742 = vmul.f32 %v732, %v349
          %v743 = vmul.f32 %v734, %v349
          %v744 = vmul.f32 %v740, %v740
          %v745 = vmin.f32 16.0, %v744
          %v746 = vmul.f32 %v745, 2.1237322e-06
          %v747 = vadd.f32 %v746, 0.00028619796
          %v748 = vmul.f32 %v745, %v747
          %v749 = vadd.f32 %v748, 0.0036580483
          %v750 = vmul.f32 %v745, %v749
          %v751 = vadd.f32 %v750, 0.05243302
          %v752 = vmul.f32 %v745, %v751
          %v753 = vadd.f32 %v752, 0.18741608
          %v754 = vmul.f32 %v745, %v753
          %v755 = vadd.f32 %v754, 1.1283791
          %v756 = vmul.f32 %v740, %v755
          %v757 = vmul.f32 %v745, 3.8918573e-05
          %v758 = vadd.f32 %v757, 0.001143296
          %v759 = vmul.f32 %v745, %v758
          %v760 = vadd.f32 %v759, 0.014752088
          %v761 = vmul.f32 %v745, %v760
          %v762 = vadd.f32 %v761, 0.112945676
          %v763 = vmul.f32 %v745, %v762
          %v764 = vadd.f32 %v763, 0.4994258
          %v765 = vmul.f32 %v745, %v764
          %v766 = vadd.f32 %v765, 1.0
          %v767 = vrcp.pop %v766
          %v768 = vmul.f32 %v766, %v767
          %v769 = vsub.f32 1.0, %v768
          %v770 = vmul.f32 %v767, %v769
          %v771 = vadd.f32 %v767, %v770
          %vm772 = vweird.f32 %v766
          %vm773 = vweird.f32 %v767
          %vm774 = vmor %vm772, %vm773
          %v775 = vsel %vm774, %v767, %v771
          %v776 = vand.u32 2147483647, %v766
          %vm777 = vcmp.eq.f32.partialorder %v776, 8.507059e+37
          %v778 = vand.u32 %v766, 2147483648
          %v779 = vor.u32 1.1754944e-38, %v778
          %v780 = vsel %vm777, %v779, %v775
          %v781 = vmul.f32 %v756, %v780
          %v782 = vmin.f32 %v781, 1.0
          %v783 = vmax.f32 %v782, -1.0
          %v784 = vmul.f32 %v741, %v741
          %v785 = vmin.f32 16.0, %v784
          %v786 = vmul.f32 %v785, 2.1237322e-06
          %v787 = vadd.f32 %v786, 0.00028619796
          %v788 = vmul.f32 %v785, %v787
          %v789 = vadd.f32 %v788, 0.0036580483
          %v790 = vmul.f32 %v785, %v789
          %v791 = vadd.f32 %v790, 0.05243302
          %v792 = vmul.f32 %v785, %v791
          %v793 = vadd.f32 %v792, 0.18741608
          %v794 = vmul.f32 %v785, %v793
          %v795 = vadd.f32 %v794, 1.1283791
          %v796 = vmul.f32 %v741, %v795
          %v797 = vmul.f32 %v785, 3.8918573e-05
          %v798 = vadd.f32 %v797, 0.001143296
          %v799 = vmul.f32 %v785, %v798
          %v800 = vadd.f32 %v799, 0.014752088
          %v801 = vmul.f32 %v785, %v800
          %v802 = vadd.f32 %v801, 0.112945676
          %v803 = vmul.f32 %v785, %v802
          %v804 = vadd.f32 %v803, 0.4994258
          %v805 = vmul.f32 %v785, %v804
          %v806 = vadd.f32 %v805, 1.0
          %v807 = vrcp.pop %v806
          %v808 = vmul.f32 %v806, %v807
          %v809 = vsub.f32 1.0, %v808
          %v810 = vmul.f32 %v807, %v809
          %v811 = vadd.f32 %v807, %v810
          %vm812 = vweird.f32 %v806
          %vm813 = vweird.f32 %v807
          %vm814 = vmor %vm812, %vm813
          %v815 = vsel %vm814, %v807, %v811
          %v816 = vand.u32 2147483647, %v806
          %vm817 = vcmp.eq.f32.partialorder %v816, 8.507059e+37
          %v818 = vand.u32 %v806, 2147483648
          %v819 = vor.u32 1.1754944e-38, %v818
          %v820 = vsel %vm817, %v819, %v815
          %v821 = vmul.f32 %v796, %v820
          %v822 = vmin.f32 %v821, 1.0
          %v823 = vmax.f32 %v822, -1.0
          %v824 = vmul.f32 %v742, %v742
          %v825 = vmin.f32 16.0, %v824
          %v826 = vmul.f32 %v825, 2.1237322e-06
          %v827 = vadd.f32 %v826, 0.00028619796
          %v828 = vmul.f32 %v825, %v827
          %v829 = vadd.f32 %v828, 0.0036580483
          %v830 = vmul.f32 %v825, %v829
          %v831 = vadd.f32 %v830, 0.05243302
          %v832 = vmul.f32 %v825, %v831
          %v833 = vadd.f32 %v832, 0.18741608
          %v834 = vmul.f32 %v825, %v833
          %v835 = vadd.f32 %v834, 1.1283791
          %v836 = vmul.f32 %v742, %v835
          %v837 = vmul.f32 %v825, 3.8918573e-05
          %v838 = vadd.f32 %v837, 0.001143296
          %v839 = vmul.f32 %v825, %v838
          %v840 = vadd.f32 %v839, 0.014752088
          %v841 = vmul.f32 %v825, %v840
          %v842 = vadd.f32 %v841, 0.112945676
          %v843 = vmul.f32 %v825, %v842
          %v844 = vadd.f32 %v843, 0.4994258
          %v845 = vmul.f32 %v825, %v844
          %v846 = vadd.f32 %v845, 1.0
          %v847 = vrcp.pop %v846
          %v848 = vmul.f32 %v846, %v847
          %v849 = vsub.f32 1.0, %v848
          %v850 = vmul.f32 %v847, %v849
          %v851 = vadd.f32 %v847, %v850
          %vm852 = vweird.f32 %v846
          %vm853 = vweird.f32 %v847
          %vm854 = vmor %vm852, %vm853
          %v855 = vsel %vm854, %v847, %v851
          %v856 = vand.u32 2147483647, %v846
          %vm857 = vcmp.eq.f32.partialorder %v856, 8.507059e+37
          %v858 = vand.u32 %v846, 2147483648
          %v859 = vor.u32 1.1754944e-38, %v858
          %v860 = vsel %vm857, %v859, %v855
          %v861 = vmul.f32 %v836, %v860
          %v862 = vmin.f32 %v861, 1.0
          %v863 = vmax.f32 %v862, -1.0
          %v864 = vmul.f32 %v743, %v743
          %v865 = vmin.f32 16.0, %v864
          %v866 = vmul.f32 %v865, 2.1237322e-06
          %v867 = vadd.f32 %v866, 0.00028619796
          %v868 = vmul.f32 %v865, %v867
          %v869 = vadd.f32 %v868, 0.0036580483
          %v870 = vmul.f32 %v865, %v869
          %v871 = vadd.f32 %v870, 0.05243302
          %v872 = vmul.f32 %v865, %v871
          %v873 = vadd.f32 %v872, 0.18741608
          %v874 = vmul.f32 %v865, %v873
          %v875 = vadd.f32 %v874, 1.1283791
          %v876 = vmul.f32 %v743, %v875
          %v877 = vmul.f32 %v865, 3.8918573e-05
          %v878 = vadd.f32 %v877, 0.001143296
          %v879 = vmul.f32 %v865, %v878
          %v880 = vadd.f32 %v879, 0.014752088
          %v881 = vmul.f32 %v865, %v880
          %v882 = vadd.f32 %v881, 0.112945676
          %v883 = vmul.f32 %v865, %v882
          %v884 = vadd.f32 %v883, 0.4994258
          %v885 = vmul.f32 %v865, %v884
          %v886 = vadd.f32 %v885, 1.0
          %v887 = vrcp.pop %v886
          %v888 = vmul.f32 %v886, %v887
          %v889 = vsub.f32 1.0, %v888
          %v890 = vmul.f32 %v887, %v889
          %v891 = vadd.f32 %v887, %v890
          %vm892 = vweird.f32 %v886
          %vm893 = vweird.f32 %v887
          %vm894 = vmor %vm892, %vm893
          %v895 = vsel %vm894, %v887, %v891
          %v896 = vand.u32 2147483647, %v886
          %vm897 = vcmp.eq.f32.partialorder %v896, 8.507059e+37
          %v898 = vand.u32 %v886, 2147483648
          %v899 = vor.u32 1.1754944e-38, %v898
          %v900 = vsel %vm897, %v899, %v895
          %v901 = vmul.f32 %v876, %v900
          %v902 = vmin.f32 %v901, 1.0
          %v903 = vmax.f32 %v902, -1.0
          %v904 = vadd.f32 %v783, 1.0
          %v905 = vadd.f32 %v823, 1.0
          %v906 = vadd.f32 %v863, 1.0
          %v907 = vadd.f32 %v903, 1.0
          %v908 = vmul.f32 %v736, %v904
          %v909 = vmul.f32 %v737, %v905
          %v910 = vmul.f32 %v738, %v906
          %v911 = vmul.f32 %v739, %v907
          %v912 = vsel %vm522, %v908, 0.0
          %913 = vadd.xlane.f32.xlu0 %v912
          %v914 = vpop.xlane.xlu0 %913
          %v915 = vsel %vm522, %v909, 0.0
          %916 = vadd.xlane.f32.xlu0 %v915
          %v917 = vpop.xlane.xlu0 %916
          %v918 = vsel %vm522, %v910, 0.0
          %919 = vadd.xlane.f32.xlu0 %v918
          %v920 = vpop.xlane.xlu0 %919
          %v921 = vsel %vm522, %v911, 0.0
          %922 = vadd.xlane.f32.xlu0 %v921
          %v923 = vpop.xlane.xlu0 %922
          %v924 = vmul.f32 %v914, %v541
          %v925 = vmul.f32 %v917, %v541
          %v926 = vmul.f32 %v920, %v541
          %v927 = vmul.f32 %v923, %v541
          %v928 = vsub.f32 %v908, %v924
          %v929 = vsub.f32 %v909, %v925
          %v930 = vsub.f32 %v910, %v926
          %v931 = vsub.f32 %v911, %v927
          %v932 = vmul.f32 %v928, %v928
          %v933 = vmul.f32 %v929, %v929
          %v934 = vmul.f32 %v930, %v930
          %v935 = vmul.f32 %v931, %v931
          %v936 = vsel %vm522, %v932, 0.0
          %937 = vadd.xlane.f32.xlu0 %v936
          %v938 = vpop.xlane.xlu0 %937
          %v939 = vsel %vm522, %v933, 0.0
          %940 = vadd.xlane.f32.xlu0 %v939
          %v941 = vpop.xlane.xlu0 %940
          %v942 = vsel %vm522, %v934, 0.0
          %943 = vadd.xlane.f32.xlu0 %v942
          %v944 = vpop.xlane.xlu0 %943
          %v945 = vsel %vm522, %v935, 0.0
          %946 = vadd.xlane.f32.xlu0 %v945
          %v947 = vpop.xlane.xlu0 %946
          %v948 = vmul.f32 %v938, %v541
          %v949 = vmul.f32 %v941, %v541
          %v950 = vmul.f32 %v944, %v541
          %v951 = vmul.f32 %v947, %v541
          %v952 = vadd.f32 %v948, 1e-12
          %v953 = vadd.f32 %v949, 1e-12
          %v954 = vadd.f32 %v950, 1e-12
          %v955 = vadd.f32 %v951, 1e-12
          %v956 = vrsqrt.pop %v952
          %v957 = vmul.f32 %v956, %v952
          %v958 = vmul.f32 %v957, %v956
          %v959 = vmul.f32 0.5, %v958
          %v960 = vsub.f32 1.5, %v959
          %v961 = vmul.f32 %v956, %v960
          %v962 = vmul.f32 %v952, %v961
          %vm963 = vcmp.eq.f32.partialorder %v952, inf
          %v964 = vsel %vm963, %v952, %v962
          %vm965 = vcmp.eq.f32.partialorder %v952, 0.0
          %v966 = vand.u32 %v952, 2147483648
          %v967 = vsel %vm965, %v966, %v964
          %v968 = vrsqrt.pop %v953
          %v969 = vmul.f32 %v968, %v953
          %v970 = vmul.f32 %v969, %v968
          %v971 = vmul.f32 0.5, %v970
          %v972 = vsub.f32 1.5, %v971
          %v973 = vmul.f32 %v968, %v972
          %v974 = vmul.f32 %v953, %v973
          %vm975 = vcmp.eq.f32.partialorder %v953, inf
          %v976 = vsel %vm975, %v953, %v974
          %vm977 = vcmp.eq.f32.partialorder %v953, 0.0
          %v978 = vand.u32 %v953, 2147483648
          %v979 = vsel %vm977, %v978, %v976
          %v980 = vrsqrt.pop %v954
          %v981 = vmul.f32 %v980, %v954
          %v982 = vmul.f32 %v981, %v980
          %v983 = vmul.f32 0.5, %v982
          %v984 = vsub.f32 1.5, %v983
          %v985 = vmul.f32 %v980, %v984
          %v986 = vmul.f32 %v954, %v985
          %vm987 = vcmp.eq.f32.partialorder %v954, inf
          %v988 = vsel %vm987, %v954, %v986
          %vm989 = vcmp.eq.f32.partialorder %v954, 0.0
          %v990 = vand.u32 %v954, 2147483648
          %v991 = vsel %vm989, %v990, %v988
          %v992 = vrsqrt.pop %v955
          %v993 = vmul.f32 %v992, %v955
          %v994 = vmul.f32 %v993, %v992
          %v995 = vmul.f32 0.5, %v994
          %v996 = vsub.f32 1.5, %v995
          %v997 = vmul.f32 %v992, %v996
          %v998 = vmul.f32 %v955, %v997
          %vm999 = vcmp.eq.f32.partialorder %v955, inf
          %v1000 = vsel %vm999, %v955, %v998
          %vm1001 = vcmp.eq.f32.partialorder %v955, 0.0
          %v1002 = vand.u32 %v955, 2147483648
          %v1003 = vsel %vm1001, %v1002, %v1000
          %v1004 = vrcp.pop %v967
          %v1005 = vmul.f32 %v967, %v1004
          %v1006 = vsub.f32 1.0, %v1005
          %v1007 = vmul.f32 %v1004, %v1006
          %v1008 = vadd.f32 %v1004, %v1007
          %vm1009 = vweird.f32 %v967
          %vm1010 = vweird.f32 %v1004
          %vm1011 = vmor %vm1009, %vm1010
          %v1012 = vsel %vm1011, %v1004, %v1008
          %v1013 = vand.u32 2147483647, %v967
          %vm1014 = vcmp.eq.f32.partialorder %v1013, 8.507059e+37
          %v1015 = vand.u32 %v967, 2147483648
          %v1016 = vor.u32 1.1754944e-38, %v1015
          %v1017 = vsel %vm1014, %v1016, %v1012
          %v1018 = vmul.f32 %v928, %v1017
          %v1019 = vrcp.pop %v979
          %v1020 = vmul.f32 %v979, %v1019
          %v1021 = vsub.f32 1.0, %v1020
          %v1022 = vmul.f32 %v1019, %v1021
          %v1023 = vadd.f32 %v1019, %v1022
          %vm1024 = vweird.f32 %v979
          %vm1025 = vweird.f32 %v1019
          %vm1026 = vmor %vm1024, %vm1025
          %v1027 = vsel %vm1026, %v1019, %v1023
          %v1028 = vand.u32 2147483647, %v979
          %vm1029 = vcmp.eq.f32.partialorder %v1028, 8.507059e+37
          %v1030 = vand.u32 %v979, 2147483648
          %v1031 = vor.u32 1.1754944e-38, %v1030
          %v1032 = vsel %vm1029, %v1031, %v1027
          %v1033 = vmul.f32 %v929, %v1032
          %v1034 = vrcp.pop %v991
          %v1035 = vmul.f32 %v991, %v1034
          %v1036 = vsub.f32 1.0, %v1035
          %v1037 = vmul.f32 %v1034, %v1036
          %v1038 = vadd.f32 %v1034, %v1037
          %vm1039 = vweird.f32 %v991
          %vm1040 = vweird.f32 %v1034
          %vm1041 = vmor %vm1039, %vm1040
          %v1042 = vsel %vm1041, %v1034, %v1038
          %v1043 = vand.u32 2147483647, %v991
          %vm1044 = vcmp.eq.f32.partialorder %v1043, 8.507059e+37
          %v1045 = vand.u32 %v991, 2147483648
          %v1046 = vor.u32 1.1754944e-38, %v1045
          %v1047 = vsel %vm1044, %v1046, %v1042
          %v1048 = vmul.f32 %v930, %v1047
          %v1049 = vrcp.pop %v1003
          %v1050 = vmul.f32 %v1003, %v1049
          %v1051 = vsub.f32 1.0, %v1050
          %v1052 = vmul.f32 %v1049, %v1051
          %v1053 = vadd.f32 %v1049, %v1052
          %vm1054 = vweird.f32 %v1003
          %vm1055 = vweird.f32 %v1049
          %vm1056 = vmor %vm1054, %vm1055
          %v1057 = vsel %vm1056, %v1049, %v1053
          %v1058 = vand.u32 2147483647, %v1003
          %vm1059 = vcmp.eq.f32.partialorder %v1058, 8.507059e+37
          %v1060 = vand.u32 %v1003, 2147483648
          %v1061 = vor.u32 1.1754944e-38, %v1060
          %v1062 = vsel %vm1059, %v1061, %v1057
          %v1063 = vmul.f32 %v931, %v1062
          %v1064 = vperm.slane %v334, 3
          %v1065 = vmul.f32 %v1064, %v1018
          %v1066 = vmul.f32 %v1064, %v1033
          %v1067 = vmul.f32 %v1064, %v1048
          %v1068 = vmul.f32 %v1064, %v1063
          %v1069 = vperm.slane %v334, 4
          %v1070 = vadd.f32 %v1065, %v1069
          %v1071 = vadd.f32 %v1066, %v1069
          %v1072 = vadd.f32 %v1067, %v1069
          %v1073 = vadd.f32 %v1068, %v1069
          %v1074 = vpack.c.bf16 %v1070, %v1070
          %v1075 = vpack.c.bf16 %v1071, %v1071
          %v1076 = vpack.c.bf16 %v1072, %v1072
          %v1077 = vpack.c.bf16 %v1073, %v1073
          %vm1078 = vcmask 257024
          %1079 = vst.msk [vmem:[#allocation2] sm:$0xf] %vm1078, %v1074
          %1080 = vst.msk [vmem:[#allocation2 + $0x4] sm:$0xf] %vm1078, %v1075
          %1081 = vst.msk [vmem:[#allocation2 + $0x8] sm:$0xf] %vm1078, %v1076
          %1082 = vst.msk [vmem:[#allocation2 + $0xc] sm:$0xf] %vm1078, %v1077
        $region82: #{tpu_custom_call.1} parent=73 // pred_fallthru
          _
        %v1083 = vld [vmem:[#allocation2] sm:$0xf]
        %v1084 = vld [vmem:[#allocation2 + $0x4] sm:$0xf]
        %v1085 = vld [vmem:[#allocation2 + $0x8] sm:$0xf]
        %v1086 = vld [vmem:[#allocation2 + $0xc] sm:$0xf]
        %v1087 = vld [vmem:[%s281] sm:$0xff]
        %v1088 = vld [vmem:[%s281 + $0x8] sm:$0xff]
        %v1089 = vld [vmem:[%s281 + $0x10] sm:$0xff]
        %v1090 = vld [vmem:[%s281 + $0x18] sm:$0xff]
        %v1091 = vld [vmem:[%s325] sm:$0x3]
        %v1093 = vperm.slane %v1091, 0
        %v1094 = vperm.slane %v1091, 1
        %v1101 = vunpack.c.l.b16 %v1083
        %v1102 = vunpack.c.l.b16 %v1084
        %v1103 = vunpack.c.l.b16 %v1085
        %v1104 = vunpack.c.l.b16 %v1086
        %v1105 = vpack.c.b16 %v1102, %v1101
        %v1106 = vpack.c.b16 %v1104, %v1103
        %v1111 = vunpack.c.l.b16 %v1087
        %v1112 = vunpack.c.h.b16 %v1087
        %v1113 = vunpack.c.l.b16 %v1088
        %v1114 = vunpack.c.h.b16 %v1088
        %v1115 = vunpack.c.l.b16 %v1089
        %v1116 = vunpack.c.h.b16 %v1089
        %v1117 = vunpack.c.l.b16 %v1090
        %v1118 = vunpack.c.h.b16 %v1090
        %v1119 = vpack.c.b16 %v1113, %v1111
        %v1120 = vpack.c.b16 %v1114, %v1112
        %v1121 = vpack.c.b16 %v1117, %v1115
        %v1122 = vpack.c.b16 %v1118, %v1116
        %vm1127 = vcmask 261120
        %v1129 = vsel %vm1127, %v1105, 0
        %v1132 = vsel %vm1127, %v1106, 0
        %1134 = vmatpush.bf16.msra.mxu0 0
        %1135 = vmatpush.bf16.msra.mxu0 0
        %1136 = vmatpush.bf16.msra.mxu0 0
        %1137 = vmatpush.bf16.msra.mxu0 0
        %1138 = vmatpush.bf16.msra.mxu0 0
        %1139 = vmatpush.bf16.msra.mxu0 0
        %1140 = vmatpush.bf16.msra.mxu0 %v1121
        %1141 = vmatpush.bf16.msra.mxu0 %v1119
        %1142 = vmatmul.bf16.gmra.mxu0 %v1129
        %v1143 = vpop.f32.mrf.mxu0
        %v1144 = vadd.f32 %v1093, %v1143
        %v1145 = vpop.f32.mrf.mxu0
        %v1146 = vadd.f32 %v1093, %v1145
        %1147 = vmatmul.bf16.gmra.mxu0 %v1132
        %v1148 = vpop.f32.mrf.mxu0
        %v1149 = vadd.f32 %v1093, %v1148
        %v1150 = vpop.f32.mrf.mxu0
        %v1151 = vadd.f32 %v1093, %v1150
        %1152 = vdwg.mxu0
        %1153 = vmatpush.bf16.msra.mxu0 0
        %1154 = vmatpush.bf16.msra.mxu0 0
        %1155 = vmatpush.bf16.msra.mxu0 0
        %1156 = vmatpush.bf16.msra.mxu0 0
        %1157 = vmatpush.bf16.msra.mxu0 0
        %1158 = vmatpush.bf16.msra.mxu0 0
        %1159 = vmatpush.bf16.msra.mxu0 %v1122
        %1160 = vmatpush.bf16.msra.mxu0 %v1120
        %1161 = vmatmul.bf16.gmra.mxu0 %v1129
        %v1162 = vpop.f32.mrf.mxu0
        %v1163 = vadd.f32 %v1094, %v1162
        %v1164 = vpop.f32.mrf.mxu0
        %v1165 = vadd.f32 %v1094, %v1164
        %1166 = vmatmul.bf16.gmra.mxu0 %v1132
        %v1167 = vpop.f32.mrf.mxu0
        %v1168 = vadd.f32 %v1094, %v1167
        %v1169 = vpop.f32.mrf.mxu0
        %v1170 = vadd.f32 %v1094, %v1169
        %1171 = vdwg.mxu0
        %v1172 = vpack.c.bf16 %v1163, %v1144
        %v1173 = vpack.c.bf16 %v1165, %v1146
        %v1174 = vpack.c.bf16 %v1168, %v1149
        %v1175 = vpack.c.bf16 %v1170, %v1151
        %1176 = vst [vmem:[%s314] sm:$0xff] %v1172
        %1177 = vst [vmem:[%s314 + $0x8] sm:$0xff] %v1173
        %1178 = vst [vmem:[%s314 + $0x10] sm:$0xff] %v1174
        %1179 = vst [vmem:[%s314 + $0x18] sm:$0xff] %v1175
        %s1180 = sand.u32 %s161, 1
        %s1181 = scalar_lea.sflag [#allocation5], %s1180
        %s1182 = sand.u32 %s161, 1
        %s1183 = smul.addr %s1182, 32
        %s1184 = scalar_lea.vmem [#allocation4], %s1183
        // Predicated region
        $region83: #{tpu_custom_call.1} parent=73 // pred_check
          %p1185 = pneg %p171
        $region84: #{tpu_custom_call.1} parent=73 // pred_check_branch
          %1187 = sbr.rel (%p1185) target = $region86
        $region85: #{tpu_custom_call.1} parent=73 // pred_region
          %s1188 = smul.u32 4, %s23
          %s1189 = smul.u32 2, %s24
          %1191 = vsyncadd %s1181, 0
          %s1192 = smul.addr %s1188, 4
          %s1193 = sadd.s32 %s1189, %s1192
          %s1194 = smul.addr %s1193, 4
          %s1195 = scalar_lea.hbm %s5, %s1194
          %s1196 = sshll.u32 %s1184, 4
          %s1197 = int_to_ptr.vmem [resolvable:$true] %s1196
          %s1198 = sshll.u32 %s1195, 4
          %s1199 = int_to_ptr.hbm [resolvable:$true] %s1198
          %1204 = dma.vmem_to_hbm [thread:$0]  %s1197, 512, %s1199, %s1181, 128, 256, 8
        $region86: #{tpu_custom_call.1} parent=73 // pred_fallthru
          _
      $region74: #{tpu_custom_call.1} parent=5 // pred_fallthru
        _
      %p1205 = scmp.le.s32.totalorder 2, %s14
      // Predicated region
      $region87: #{tpu_custom_call.1} parent=5 // pred_check
        %p1206 = pneg %p1205
      $region88: #{tpu_custom_call.1} parent=5 // pred_check_branch
        %1208 = sbr.rel (%p1206) target = $region90
      $region89: #{tpu_custom_call.1} parent=5 // pred_region
        %s1209 = ssub.s32 %s14, 2
        // Predicated region
        $region91: #{tpu_custom_call.1} parent=89 // pred_check
          %p1210 = pneg %p177
        $region92: #{tpu_custom_call.1} parent=89 // pred_check_branch
          %1212 = sbr.rel (%p1210) target = $region94
        $region93: #{tpu_custom_call.1} parent=89 // pred_region
          %s1213 = sand.u32 %s162, 1
          %s1214 = scalar_lea.sflag [#allocation5], %s1213
          %s1215 = sand.u32 %s162, 1
          %s1216 = smul.addr %s1215, 32
          %s1217 = scalar_lea.vmem [#allocation4], %s1216
          %1219 = dma.done %s1214, 512
        $region94: #{tpu_custom_call.1} parent=89 // pred_fallthru
          _
      $region90: #{tpu_custom_call.1} parent=5 // pred_fallthru
        _
    $region6: #{tpu_custom_call.1} parent=1 // loop_footer
      %s18 = sadd.s32 1, %s14
    $region7: #{tpu_custom_call.1} parent=1 // loop_footer_branch
      %13 = sbr.rel target = $region3
    $region8: #{tpu_custom_call.1} parent=1 // loop_exit
      _
    %1220 = vsyncpa [#allocation5], 1
    %s1221 = scalar_lea.sflag [#allocation5], 1
    %1222 = vsyncpa %s1221, 1

</llo_original>
